<compile_context>
chip_gen: v5e
topology: v5e:2x2
jax: 0.10.0
libtpu: 0.0.40
codegen_flags: <defaults>
</compile_context>

<pallas_src>
import functools

import jax
import jax.numpy as jnp
import numpy as np
from jax import lax
from jax.experimental import pallas as pl
from jax.experimental.pallas import tpu as pltpu

EPS = 1e-5


def _linear_block_kernel(batch_ref, x_ref, pvec_ref,
                         w1_ref, w2_ref, w3_ref, w4_ref, w5_ref,
                         out_ref, *, num_graphs):
    n_nodes, n_feats = x_ref.shape
    snd = n_feats // 2
    ng = num_graphs

    x = x_ref[...].T                                       # [F, N] in-kernel transpose (XLU)

    # Lane-dense graph membership, built in-kernel: only [B, N], never [N, B]/[N, 1].
    batch_row = batch_ref[...]                             # [1, N] int32
    oht = (lax.broadcasted_iota(jnp.int32, (ng, n_nodes), 0)
           == batch_row).astype(jnp.float32)               # [B, N]
    counts = jnp.sum(oht, axis=1, keepdims=True)           # [B, 1]
    # Fold 1/counts into the mean-gather matrix (clamp guards empty graphs; identical
    # results when every graph is non-empty).
    oht_mean = oht * (1.0 / jnp.maximum(counts, 1.0))      # [B, N]

    # ---- packed per-feature vectors: pvec is [n_feats, 21] --------------------------
    #  cols 0..14 : gn{1..5} (weight, bias, mean_scale); gn2..5 valid in rows [:snd]
    #  cols 15..19: lin{1..5} bias (lin1..4 valid in rows [:snd])
    #  col  20    : PReLU slopes in rows 0..3
    def gn_vec(idx, f):
        c = 3 * idx
        return (pvec_ref[:f, c:c + 1], pvec_ref[:f, c + 1:c + 2], pvec_ref[:f, c + 2:c + 3])

    def lin_bias(idx, f):
        return pvec_ref[:f, 15 + idx:16 + idx]

    def prelu_slope(i):
        return pvec_ref[i:i + 1, 20:21]                    # [1, 1], broadcasts

    def gather_mean(v):
        # per-graph mean: contract the lane/N axis of both operands -> [F, B]
        return lax.dot_general(v, oht_mean, (((1,), (1,)), ((), ())),
                               preferred_element_type=jnp.float32)

    def gn_batched(v, idx):
        f = v.shape[0]
        w, b, s = gn_vec(idx, f)                           # [F, 1] each
        mean = gather_mean(v)                              # [F, B]
        ex2 = gather_mean(v * v)                           # [F, B]
        # var = E[(x - s*mean)^2] = E[x^2] - (2s - s^2)*mean^2, clamped >= 0
        var = jnp.maximum(ex2 - (2.0 * s - s * s) * (mean * mean), 0.0)
        sc = lax.rsqrt(var + EPS)                          # [F, B] per-graph scale
        sh = -s * mean * sc                                # [F, B] per-graph shift
        # scatter back to nodes: two small [F,B]@[B,N] matmuls (no [2F,*] concat temp)
        scale_n = jnp.dot(sc, oht, preferred_element_type=jnp.float32)   # [F, N]
        shift_n = jnp.dot(sh, oht, preferred_element_type=jnp.float32)   # [F, N]
        return w * (v * scale_n + shift_n) + b

    def gn_global(v, idx):
        # GraphNorm with batch=None: the whole tensor is one graph (lane reduction).
        f = v.shape[0]
        w, b, s = gn_vec(idx, f)
        mean = jnp.mean(v, axis=1, keepdims=True)          # [F, 1]
        out = v - s * mean
        var = jnp.mean(out * out, axis=1, keepdims=True)
        return w * out * lax.rsqrt(var + EPS) + b

    def prelu(v, i):
        a = prelu_slope(i)
        return jnp.where(v >= 0.0, v, a * v)

    def linear(v, w_ref, idx, fout):
        # W is PyTorch-native [out, in]:  y = W @ v + b
        return (jnp.dot(w_ref[...], v, preferred_element_type=jnp.float32)
                + lin_bias(idx, fout))

    # x = lin1(gn1(x, batch))
    h = linear(gn_batched(x, 0), w1_ref, 0, snd)                          # [snd, N]
    # x = (lin3(gn3(lin2(gn2(x, batch)))) + x) / 2        (gn3 has NO batch)
    t = linear(prelu(gn_batched(h, 1), 0), w2_ref, 1, snd)
    t = linear(prelu(gn_global(t, 2), 1), w3_ref, 2, snd)
    h = (t + h) * 0.5
    # x = (lin4(gn4(x, batch)) + x) / 2
    h = (linear(prelu(gn_batched(h, 3), 2), w4_ref, 3, snd) + h) * 0.5
    # x = lin5(gn5(x, batch))
    y = linear(prelu(gn_batched(h, 4), 3), w5_ref, 4, n_feats)            # [F, N]

    out_ref[...] = y.T                                     # store already node-major [N, F]


def _round_up(v, m):
    return -(-int(v) // m) * m


def _padded_vmem_bytes(shape, itemsize=4):
    # lane/sublane-padded footprint of a 2-D VMEM buffer
    if len(shape) == 1:
        r, c = 1, shape[0]
    else:
        r, c = int(np.prod(shape[:-1])), shape[-1]
    return _round_up(max(r, 1), 8) * _round_up(max(c, 1), 128) * itemsize


def linear_block_forward(x, batch, num_graphs, p):
    n_nodes, n_feats = x.shape
    snd = n_feats // 2

    x = x.astype(jnp.float32)                              # consumed node-major; kernel transposes
    batch_row = batch.astype(jnp.int32).reshape(1, n_nodes)

    # Pack all per-feature vectors / biases / PReLU slopes into one [F, 21] array.
    def col(vec):
        v = jnp.asarray(vec, jnp.float32).reshape(-1)
        return jnp.pad(v, (0, n_feats - v.shape[0])).reshape(n_feats, 1)

    cols = []
    for gk in ("gn1", "gn2", "gn3", "gn4", "gn5"):
        cols += [col(a) for a in p[gk]]                    # weight, bias, mean_scale
    for lk in ("lin1", "lin2", "lin3", "lin4", "lin5"):
        cols.append(col(p[lk][1]))                         # biases
    cols.append(col(p["prelu"]))                           # PReLU slopes (rows 0..3)
    pvec = jnp.concatenate(cols, axis=1)                   # [n_feats, 21]

    weights = [jnp.asarray(p[k][0], jnp.float32)
               for k in ("lin1", "lin2", "lin3", "lin4", "lin5")]

    # Generation-aware VMEM budget from PADDED footprints.
    n_pad = _round_up(n_nodes, 128)
    io_bytes = (2 * _padded_vmem_bytes((n_nodes, n_feats))         # x + out (node-major)
                + _padded_vmem_bytes((1, n_nodes))                 # batch row (int32)
                + _padded_vmem_bytes(pvec.shape)
                + sum(_padded_vmem_bytes(w.shape) for w in weights))
    work_bytes = ((12 * _round_up(n_feats, 8) + 3 * 8) * n_pad     # [F,N] temps + [B,N] masks
                  + 8 * _round_up(n_feats, 8) * 128) * 4           # per-graph stats
    try:
        cap_phys = int(pltpu.get_tpu_info().vmem_capacity_bytes)
    except Exception:
        cap_phys = 128 << 20
    # v7x (64 MiB/TC): never ask for all of it; v5e/v6e (128 MiB): allow ~112 MiB.
    cap = (48 << 20) if cap_phys <= (64 << 20) else min(cap_phys - (16 << 20), 112 << 20)
    vmem_limit = int(min(max(2 * (io_bytes + work_bytes), 16 << 20), cap))

    kernel = functools.partial(_linear_block_kernel, num_graphs=num_graphs)
    out = pl.pallas_call(
        kernel,
        out_shape=jax.ShapeDtypeStruct((n_nodes, n_feats), jnp.float32),
        in_specs=[pl.BlockSpec(memory_space=pltpu.MemorySpace.VMEM)] * (3 + len(weights)),
        out_specs=pl.BlockSpec(memory_space=pltpu.MemorySpace.VMEM),
        compiler_params=pltpu.CompilerParams(vmem_limit_bytes=vmem_limit),
    )(batch_row, x, pvec, *weights)
    return out                                             # already [N, F]


# ----------------------- pure-JAX reference (for checking) -----------------------
def _gn_ref(x, batch, num_graphs, weight, bias, mean_scale):
    w, b, s = weight[None, :], bias[None, :], mean_scale[None, :]
    if batch is None:
        mean = jnp.mean(x, axis=0, keepdims=True)
        out = x - s * mean
        var = jnp.mean(out * out, axis=0, keepdims=True)
        return w * out / jnp.sqrt(var + EPS) + b
    counts = jax.ops.segment_sum(jnp.ones((x.shape[0],), jnp.float32), batch,
                                 num_segments=num_graphs)
    mean = jax.ops.segment_sum(x, batch, num_segments=num_graphs) / counts[:, None]
    out = x - s * mean[batch]
    var = jax.ops.segment_sum(out * out, batch, num_segments=num_graphs) / counts[:, None]
    return w * out / jnp.sqrt(var[batch] + EPS) + b


def _prelu_ref(x, a):
    return jnp.where(x >= 0.0, x, a * x)


def linear_block_ref(x, batch, num_graphs, p):
    a2, a3, a4, a5 = [p["prelu"][i] for i in range(4)]
    lin = lambda v, wb: jnp.dot(v, wb[0].T) + wb[1][None, :]   # W is [out, in]
    h = lin(_gn_ref(x, batch, num_graphs, *p["gn1"]), p["lin1"])
    t = lin(_prelu_ref(_gn_ref(h, batch, num_graphs, *p["gn2"]), a2), p["lin2"])
    t = lin(_prelu_ref(_gn_ref(t, None, num_graphs, *p["gn3"]), a3), p["lin3"])
    h = (t + h) / 2
    h = (lin(_prelu_ref(_gn_ref(h, batch, num_graphs, *p["gn4"]), a4), p["lin4"]) + h) / 2
    return lin(_prelu_ref(_gn_ref(h, batch, num_graphs, *p["gn5"]), a5), p["lin5"])


# ----------------------- deterministic parameter init -----------------------
def init_params(key, n_feats):
    snd = n_feats // 2

    def init_linear(k, fin, fout):
        k1, k2 = jax.random.split(k)
        bound = 1.0 / np.sqrt(fin)
        w = jax.random.uniform(k1, (fout, fin), jnp.float32, -bound, bound)  # [out, in]
        b = jax.random.uniform(k2, (fout,), jnp.float32, -bound, bound)
        return (w, b)

    def init_gn(f):
        # GraphNorm defaults: weight=1, bias=0, mean_scale=1
        return (jnp.ones((f,), jnp.float32),
                jnp.zeros((f,), jnp.float32),
                jnp.ones((f,), jnp.float32))

    ks = jax.random.split(key, 5)
    return {
        "gn1": init_gn(n_feats), "lin1": init_linear(ks[0], n_feats, snd),
        "gn2": init_gn(snd),     "lin2": init_linear(ks[1], snd, snd),
        "gn3": init_gn(snd),     "lin3": init_linear(ks[2], snd, snd),
        "gn4": init_gn(snd),     "lin4": init_linear(ks[3], snd, snd),
        "gn5": init_gn(snd),     "lin5": init_linear(ks[4], snd, n_feats),
        "prelu": jnp.full((4,), 0.25, jnp.float32),   # nn.PReLU() default slope
    }


if __name__ == "__main__":
    n_feats = 32          # => snd_n_feats = 16
    N = 24                # total nodes (unequal graph sizes exercise 1/counts)
    num_graphs = 2
    batch = jnp.array([0] * 10 + [1] * 14, dtype=jnp.int32)

    key = jax.random.PRNGKey(0)
    kx, kp = jax.random.split(key)
    x = jax.random.normal(kx, (N, n_feats), jnp.float32)
    params = init_params(kp, n_feats)

    out = jax.block_until_ready(linear_block_forward(x, batch, num_graphs, params))
    ref = jax.block_until_ready(linear_block_ref(x, batch, num_graphs, params))
    np.testing.assert_allclose(np.asarray(out), np.asarray(ref), rtol=1e-4, atol=1e-4)

    print("KERNEL_OK")
</pallas_src>

<mosaic_0001>
module attributes {stable_mosaic.version = 11 : i64} {
  func.func @_linear_block_kernel(%arg0: memref<1x24xi32, #tpu.memory_space<vmem>>, %arg1: memref<24x32xf32, #tpu.memory_space<vmem>>, %arg2: memref<32x21xf32, #tpu.memory_space<vmem>>, %arg3: memref<16x32xf32, #tpu.memory_space<vmem>>, %arg4: memref<16x16xf32, #tpu.memory_space<vmem>>, %arg5: memref<16x16xf32, #tpu.memory_space<vmem>>, %arg6: memref<16x16xf32, #tpu.memory_space<vmem>>, %arg7: memref<32x16xf32, #tpu.memory_space<vmem>>, %arg8: memref<24x32xf32, #tpu.memory_space<vmem>>) attributes {dimension_semantics = [], scalar_prefetch = 0 : i64, scratch_operands = 0 : i64, tpu.core_type = #tpu.core_type<tc>} {
    %c0 = arith.constant 0 : index
    %c0_0 = arith.constant 0 : index
    %0 = vector.load %arg1[%c0, %c0_0] : memref<24x32xf32, #tpu.memory_space<vmem>>, vector<24x32xf32>
    %1 = tpu.transpose %0, [1, 0] : vector<24x32xf32> -> vector<32x24xf32>
    %c0_1 = arith.constant 0 : index
    %c0_2 = arith.constant 0 : index
    %2 = vector.load %arg0[%c0_1, %c0_2] : memref<1x24xi32, #tpu.memory_space<vmem>>, vector<1x24xi32>
    %3 = tpu.iota {dimensions = array<i32: 0>} : vector<2x24xi32>
    %4 = vector.broadcast %2 : vector<1x24xi32> to vector<2x24xi32>
    %5 = arith.cmpi eq, %3, %4 : vector<2x24xi32>
    %6 = arith.extui %5 : vector<2x24xi1> to vector<2x24xi32>
    %7 = arith.sitofp %6 : vector<2x24xi32> to vector<2x24xf32>
    %cst = arith.constant dense<0.000000e+00> : vector<2xf32>
    %8 = vector.multi_reduction <add>, %7, %cst [1] : vector<2x24xf32> to vector<2xf32>
    %9 = vector.shape_cast %8 : vector<2xf32> to vector<2x1xf32>
    %cst_3 = arith.constant 1.000000e+00 : f32
    %10 = vector.broadcast %cst_3 : f32 to vector<2x1xf32>
    %11 = arith.maximumf %9, %10 : vector<2x1xf32>
    %cst_4 = arith.constant 1.000000e+00 : f32
    %12 = vector.broadcast %cst_4 : f32 to vector<2x1xf32>
    %13 = arith.divf %12, %11 : vector<2x1xf32>
    %14 = vector.broadcast %13 : vector<2x1xf32> to vector<2x24xf32>
    %15 = arith.mulf %7, %14 : vector<2x24xf32>
    %c0_5 = arith.constant 0 : index
    %c0_6 = arith.constant 0 : index
    %16 = vector.load %arg2[%c0_5, %c0_6] : memref<32x21xf32, #tpu.memory_space<vmem>>, vector<32x1xf32>
    %c0_7 = arith.constant 0 : index
    %c1 = arith.constant 1 : index
    %17 = vector.load %arg2[%c0_7, %c1] : memref<32x21xf32, #tpu.memory_space<vmem>>, vector<32x1xf32>
    %c0_8 = arith.constant 0 : index
    %c2 = arith.constant 2 : index
    %18 = vector.load %arg2[%c0_8, %c2] : memref<32x21xf32, #tpu.memory_space<vmem>>, vector<32x1xf32>
    %cst_9 = arith.constant dense<0.000000e+00> : vector<32x2xf32>
    %19 = tpu.matmul %1, %15, %cst_9 {dimension_numbers = #tpu.dot_dimension_numbers<[1], [1], [0], [0], [0, 0, 1, 0], [], []>} : vector<32x24xf32>, vector<2x24xf32>, vector<32x2xf32> -> vector<32x2xf32>
    %20 = arith.mulf %1, %1 : vector<32x24xf32>
    %cst_10 = arith.constant dense<0.000000e+00> : vector<32x2xf32>
    %21 = tpu.matmul %20, %15, %cst_10 {dimension_numbers = #tpu.dot_dimension_numbers<[1], [1], [0], [0], [0, 0, 1, 0], [], []>} : vector<32x24xf32>, vector<2x24xf32>, vector<32x2xf32> -> vector<32x2xf32>
    %cst_11 = arith.constant 2.000000e+00 : f32
    %22 = vector.broadcast %cst_11 : f32 to vector<32x1xf32>
    %23 = arith.mulf %22, %18 : vector<32x1xf32>
    %24 = arith.mulf %18, %18 : vector<32x1xf32>
    %25 = arith.subf %23, %24 : vector<32x1xf32>
    %26 = arith.mulf %19, %19 : vector<32x2xf32>
    %27 = vector.broadcast %25 : vector<32x1xf32> to vector<32x2xf32>
    %28 = arith.mulf %27, %26 : vector<32x2xf32>
    %29 = arith.subf %21, %28 : vector<32x2xf32>
    %cst_12 = arith.constant 0.000000e+00 : f32
    %30 = vector.broadcast %cst_12 : f32 to vector<32x2xf32>
    %31 = arith.maximumf %29, %30 : vector<32x2xf32>
    %cst_13 = arith.constant 9.99999974E-6 : f32
    %32 = vector.broadcast %cst_13 : f32 to vector<32x2xf32>
    %33 = arith.addf %31, %32 : vector<32x2xf32>
    %34 = math.rsqrt %33 : vector<32x2xf32>
    %cst_14 = arith.constant 0.000000e+00 : f32
    %35 = vector.broadcast %cst_14 : f32 to vector<32x1xf32>
    %36 = arith.subf %35, %18 : vector<32x1xf32>
    %37 = vector.broadcast %36 : vector<32x1xf32> to vector<32x2xf32>
    %38 = arith.mulf %37, %19 : vector<32x2xf32>
    %39 = arith.mulf %38, %34 : vector<32x2xf32>
    %cst_15 = arith.constant dense<0.000000e+00> : vector<32x24xf32>
    %40 = tpu.matmul %34, %7, %cst_15 {dimension_numbers = #tpu.dot_dimension_numbers<[1], [0], [0], [1], [0, 0, 1, 1], [], []>} : vector<32x2xf32>, vector<2x24xf32>, vector<32x24xf32> -> vector<32x24xf32>
    %cst_16 = arith.constant dense<0.000000e+00> : vector<32x24xf32>
    %41 = tpu.matmul %39, %7, %cst_16 {dimension_numbers = #tpu.dot_dimension_numbers<[1], [0], [0], [1], [0, 0, 1, 1], [], []>} : vector<32x2xf32>, vector<2x24xf32>, vector<32x24xf32> -> vector<32x24xf32>
    %42 = arith.mulf %1, %40 : vector<32x24xf32>
    %43 = arith.addf %42, %41 : vector<32x24xf32>
    %44 = vector.broadcast %16 : vector<32x1xf32> to vector<32x24xf32>
    %45 = arith.mulf %44, %43 : vector<32x24xf32>
    %46 = vector.broadcast %17 : vector<32x1xf32> to vector<32x24xf32>
    %47 = arith.addf %45, %46 : vector<32x24xf32>
    %c0_17 = arith.constant 0 : index
    %c0_18 = arith.constant 0 : index
    %48 = vector.load %arg3[%c0_17, %c0_18] : memref<16x32xf32, #tpu.memory_space<vmem>>, vector<16x32xf32>
    %cst_19 = arith.constant dense<0.000000e+00> : vector<16x24xf32>
    %49 = tpu.matmul %48, %47, %cst_19 {dimension_numbers = #tpu.dot_dimension_numbers<[1], [0], [0], [1], [0, 0, 1, 1], [], []>} : vector<16x32xf32>, vector<32x24xf32>, vector<16x24xf32> -> vector<16x24xf32>
    %c0_20 = arith.constant 0 : index
    %c15 = arith.constant 15 : index
    %50 = vector.load %arg2[%c0_20, %c15] : memref<32x21xf32, #tpu.memory_space<vmem>>, vector<16x1xf32>
    %51 = vector.broadcast %50 : vector<16x1xf32> to vector<16x24xf32>
    %52 = arith.addf %49, %51 : vector<16x24xf32>
    %c0_21 = arith.constant 0 : index
    %c3 = arith.constant 3 : index
    %53 = vector.load %arg2[%c0_21, %c3] : memref<32x21xf32, #tpu.memory_space<vmem>>, vector<16x1xf32>
    %c0_22 = arith.constant 0 : index
    %c4 = arith.constant 4 : index
    %54 = vector.load %arg2[%c0_22, %c4] : memref<32x21xf32, #tpu.memory_space<vmem>>, vector<16x1xf32>
    %c0_23 = arith.constant 0 : index
    %c5 = arith.constant 5 : index
    %55 = vector.load %arg2[%c0_23, %c5] : memref<32x21xf32, #tpu.memory_space<vmem>>, vector<16x1xf32>
    %cst_24 = arith.constant dense<0.000000e+00> : vector<16x2xf32>
    %56 = tpu.matmul %52, %15, %cst_24 {dimension_numbers = #tpu.dot_dimension_numbers<[1], [1], [0], [0], [0, 0, 1, 0], [], []>} : vector<16x24xf32>, vector<2x24xf32>, vector<16x2xf32> -> vector<16x2xf32>
    %57 = arith.mulf %52, %52 : vector<16x24xf32>
    %cst_25 = arith.constant dense<0.000000e+00> : vector<16x2xf32>
    %58 = tpu.matmul %57, %15, %cst_25 {dimension_numbers = #tpu.dot_dimension_numbers<[1], [1], [0], [0], [0, 0, 1, 0], [], []>} : vector<16x24xf32>, vector<2x24xf32>, vector<16x2xf32> -> vector<16x2xf32>
    %cst_26 = arith.constant 2.000000e+00 : f32
    %59 = vector.broadcast %cst_26 : f32 to vector<16x1xf32>
    %60 = arith.mulf %59, %55 : vector<16x1xf32>
    %61 = arith.mulf %55, %55 : vector<16x1xf32>
    %62 = arith.subf %60, %61 : vector<16x1xf32>
    %63 = arith.mulf %56, %56 : vector<16x2xf32>
    %64 = vector.broadcast %62 : vector<16x1xf32> to vector<16x2xf32>
    %65 = arith.mulf %64, %63 : vector<16x2xf32>
    %66 = arith.subf %58, %65 : vector<16x2xf32>
    %cst_27 = arith.constant 0.000000e+00 : f32
    %67 = vector.broadcast %cst_27 : f32 to vector<16x2xf32>
    %68 = arith.maximumf %66, %67 : vector<16x2xf32>
    %cst_28 = arith.constant 9.99999974E-6 : f32
    %69 = vector.broadcast %cst_28 : f32 to vector<16x2xf32>
    %70 = arith.addf %68, %69 : vector<16x2xf32>
    %71 = math.rsqrt %70 : vector<16x2xf32>
    %cst_29 = arith.constant 0.000000e+00 : f32
    %72 = vector.broadcast %cst_29 : f32 to vector<16x1xf32>
    %73 = arith.subf %72, %55 : vector<16x1xf32>
    %74 = vector.broadcast %73 : vector<16x1xf32> to vector<16x2xf32>
    %75 = arith.mulf %74, %56 : vector<16x2xf32>
    %76 = arith.mulf %75, %71 : vector<16x2xf32>
    %cst_30 = arith.constant dense<0.000000e+00> : vector<16x24xf32>
    %77 = tpu.matmul %71, %7, %cst_30 {dimension_numbers = #tpu.dot_dimension_numbers<[1], [0], [0], [1], [0, 0, 1, 1], [], []>} : vector<16x2xf32>, vector<2x24xf32>, vector<16x24xf32> -> vector<16x24xf32>
    %cst_31 = arith.constant dense<0.000000e+00> : vector<16x24xf32>
    %78 = tpu.matmul %76, %7, %cst_31 {dimension_numbers = #tpu.dot_dimension_numbers<[1], [0], [0], [1], [0, 0, 1, 1], [], []>} : vector<16x2xf32>, vector<2x24xf32>, vector<16x24xf32> -> vector<16x24xf32>
    %79 = arith.mulf %52, %77 : vector<16x24xf32>
    %80 = arith.addf %79, %78 : vector<16x24xf32>
    %81 = vector.broadcast %53 : vector<16x1xf32> to vector<16x24xf32>
    %82 = arith.mulf %81, %80 : vector<16x24xf32>
    %83 = vector.broadcast %54 : vector<16x1xf32> to vector<16x24xf32>
    %84 = arith.addf %82, %83 : vector<16x24xf32>
    %c0_32 = arith.constant 0 : index
    %c20 = arith.constant 20 : index
    %85 = vector.load %arg2[%c0_32, %c20] : memref<32x21xf32, #tpu.memory_space<vmem>>, vector<1x1xf32>
    %cst_33 = arith.constant 0.000000e+00 : f32
    %86 = vector.broadcast %cst_33 : f32 to vector<16x24xf32>
    %87 = arith.cmpf oge, %84, %86 : vector<16x24xf32>
    %88 = vector.broadcast %85 : vector<1x1xf32> to vector<16x24xf32>
    %89 = arith.mulf %88, %84 : vector<16x24xf32>
    %90 = arith.select %87, %84, %89 : vector<16x24xi1>, vector<16x24xf32>
    %c0_34 = arith.constant 0 : index
    %c0_35 = arith.constant 0 : index
    %91 = vector.load %arg4[%c0_34, %c0_35] : memref<16x16xf32, #tpu.memory_space<vmem>>, vector<16x16xf32>
    %cst_36 = arith.constant dense<0.000000e+00> : vector<16x24xf32>
    %92 = tpu.matmul %91, %90, %cst_36 {dimension_numbers = #tpu.dot_dimension_numbers<[1], [0], [0], [1], [0, 0, 1, 1], [], []>} : vector<16x16xf32>, vector<16x24xf32>, vector<16x24xf32> -> vector<16x24xf32>
    %c0_37 = arith.constant 0 : index
    %c16 = arith.constant 16 : index
    %93 = vector.load %arg2[%c0_37, %c16] : memref<32x21xf32, #tpu.memory_space<vmem>>, vector<16x1xf32>
    %94 = vector.broadcast %93 : vector<16x1xf32> to vector<16x24xf32>
    %95 = arith.addf %92, %94 : vector<16x24xf32>
    %c0_38 = arith.constant 0 : index
    %c6 = arith.constant 6 : index
    %96 = vector.load %arg2[%c0_38, %c6] : memref<32x21xf32, #tpu.memory_space<vmem>>, vector<16x1xf32>
    %c0_39 = arith.constant 0 : index
    %c7 = arith.constant 7 : index
    %97 = vector.load %arg2[%c0_39, %c7] : memref<32x21xf32, #tpu.memory_space<vmem>>, vector<16x1xf32>
    %c0_40 = arith.constant 0 : index
    %c8 = arith.constant 8 : index
    %98 = vector.load %arg2[%c0_40, %c8] : memref<32x21xf32, #tpu.memory_space<vmem>>, vector<16x1xf32>
    %cst_41 = arith.constant dense<0.000000e+00> : vector<16xf32>
    %99 = vector.multi_reduction <add>, %95, %cst_41 [1] : vector<16x24xf32> to vector<16xf32>
    %100 = vector.shape_cast %99 : vector<16xf32> to vector<16x1xf32>
    %cst_42 = arith.constant 2.400000e+01 : f32
    %101 = vector.broadcast %cst_42 : f32 to vector<16x1xf32>
    %102 = arith.divf %100, %101 : vector<16x1xf32>
    %103 = arith.mulf %98, %102 : vector<16x1xf32>
    %104 = vector.broadcast %103 : vector<16x1xf32> to vector<16x24xf32>
    %105 = arith.subf %95, %104 : vector<16x24xf32>
    %106 = arith.mulf %105, %105 : vector<16x24xf32>
    %cst_43 = arith.constant dense<0.000000e+00> : vector<16xf32>
    %107 = vector.multi_reduction <add>, %106, %cst_43 [1] : vector<16x24xf32> to vector<16xf32>
    %108 = vector.shape_cast %107 : vector<16xf32> to vector<16x1xf32>
    %cst_44 = arith.constant 2.400000e+01 : f32
    %109 = vector.broadcast %cst_44 : f32 to vector<16x1xf32>
    %110 = arith.divf %108, %109 : vector<16x1xf32>
    %111 = vector.broadcast %96 : vector<16x1xf32> to vector<16x24xf32>
    %112 = arith.mulf %111, %105 : vector<16x24xf32>
    %cst_45 = arith.constant 9.99999974E-6 : f32
    %113 = vector.broadcast %cst_45 : f32 to vector<16x1xf32>
    %114 = arith.addf %110, %113 : vector<16x1xf32>
    %115 = math.rsqrt %114 : vector<16x1xf32>
    %116 = vector.broadcast %115 : vector<16x1xf32> to vector<16x24xf32>
    %117 = arith.mulf %112, %116 : vector<16x24xf32>
    %118 = vector.broadcast %97 : vector<16x1xf32> to vector<16x24xf32>
    %119 = arith.addf %117, %118 : vector<16x24xf32>
    %c1_46 = arith.constant 1 : index
    %c20_47 = arith.constant 20 : index
    %120 = vector.load %arg2[%c1_46, %c20_47] : memref<32x21xf32, #tpu.memory_space<vmem>>, vector<1x1xf32>
    %cst_48 = arith.constant 0.000000e+00 : f32
    %121 = vector.broadcast %cst_48 : f32 to vector<16x24xf32>
    %122 = arith.cmpf oge, %119, %121 : vector<16x24xf32>
    %123 = vector.broadcast %120 : vector<1x1xf32> to vector<16x24xf32>
    %124 = arith.mulf %123, %119 : vector<16x24xf32>
    %125 = arith.select %122, %119, %124 : vector<16x24xi1>, vector<16x24xf32>
    %c0_49 = arith.constant 0 : index
    %c0_50 = arith.constant 0 : index
    %126 = vector.load %arg5[%c0_49, %c0_50] : memref<16x16xf32, #tpu.memory_space<vmem>>, vector<16x16xf32>
    %cst_51 = arith.constant dense<0.000000e+00> : vector<16x24xf32>
    %127 = tpu.matmul %126, %125, %cst_51 {dimension_numbers = #tpu.dot_dimension_numbers<[1], [0], [0], [1], [0, 0, 1, 1], [], []>} : vector<16x16xf32>, vector<16x24xf32>, vector<16x24xf32> -> vector<16x24xf32>
    %c0_52 = arith.constant 0 : index
    %c17 = arith.constant 17 : index
    %128 = vector.load %arg2[%c0_52, %c17] : memref<32x21xf32, #tpu.memory_space<vmem>>, vector<16x1xf32>
    %129 = vector.broadcast %128 : vector<16x1xf32> to vector<16x24xf32>
    %130 = arith.addf %127, %129 : vector<16x24xf32>
    %131 = arith.addf %130, %52 : vector<16x24xf32>
    %cst_53 = arith.constant 5.000000e-01 : f32
    %132 = vector.broadcast %cst_53 : f32 to vector<16x24xf32>
    %133 = arith.mulf %131, %132 : vector<16x24xf32>
    %c0_54 = arith.constant 0 : index
    %c9 = arith.constant 9 : index
    %134 = vector.load %arg2[%c0_54, %c9] : memref<32x21xf32, #tpu.memory_space<vmem>>, vector<16x1xf32>
    %c0_55 = arith.constant 0 : index
    %c10 = arith.constant 10 : index
    %135 = vector.load %arg2[%c0_55, %c10] : memref<32x21xf32, #tpu.memory_space<vmem>>, vector<16x1xf32>
    %c0_56 = arith.constant 0 : index
    %c11 = arith.constant 11 : index
    %136 = vector.load %arg2[%c0_56, %c11] : memref<32x21xf32, #tpu.memory_space<vmem>>, vector<16x1xf32>
    %cst_57 = arith.constant dense<0.000000e+00> : vector<16x2xf32>
    %137 = tpu.matmul %133, %15, %cst_57 {dimension_numbers = #tpu.dot_dimension_numbers<[1], [1], [0], [0], [0, 0, 1, 0], [], []>} : vector<16x24xf32>, vector<2x24xf32>, vector<16x2xf32> -> vector<16x2xf32>
    %138 = arith.mulf %133, %133 : vector<16x24xf32>
    %cst_58 = arith.constant dense<0.000000e+00> : vector<16x2xf32>
    %139 = tpu.matmul %138, %15, %cst_58 {dimension_numbers = #tpu.dot_dimension_numbers<[1], [1], [0], [0], [0, 0, 1, 0], [], []>} : vector<16x24xf32>, vector<2x24xf32>, vector<16x2xf32> -> vector<16x2xf32>
    %cst_59 = arith.constant 2.000000e+00 : f32
    %140 = vector.broadcast %cst_59 : f32 to vector<16x1xf32>
    %141 = arith.mulf %140, %136 : vector<16x1xf32>
    %142 = arith.mulf %136, %136 : vector<16x1xf32>
    %143 = arith.subf %141, %142 : vector<16x1xf32>
    %144 = arith.mulf %137, %137 : vector<16x2xf32>
    %145 = vector.broadcast %143 : vector<16x1xf32> to vector<16x2xf32>
    %146 = arith.mulf %145, %144 : vector<16x2xf32>
    %147 = arith.subf %139, %146 : vector<16x2xf32>
    %cst_60 = arith.constant 0.000000e+00 : f32
    %148 = vector.broadcast %cst_60 : f32 to vector<16x2xf32>
    %149 = arith.maximumf %147, %148 : vector<16x2xf32>
    %cst_61 = arith.constant 9.99999974E-6 : f32
    %150 = vector.broadcast %cst_61 : f32 to vector<16x2xf32>
    %151 = arith.addf %149, %150 : vector<16x2xf32>
    %152 = math.rsqrt %151 : vector<16x2xf32>
    %cst_62 = arith.constant 0.000000e+00 : f32
    %153 = vector.broadcast %cst_62 : f32 to vector<16x1xf32>
    %154 = arith.subf %153, %136 : vector<16x1xf32>
    %155 = vector.broadcast %154 : vector<16x1xf32> to vector<16x2xf32>
    %156 = arith.mulf %155, %137 : vector<16x2xf32>
    %157 = arith.mulf %156, %152 : vector<16x2xf32>
    %cst_63 = arith.constant dense<0.000000e+00> : vector<16x24xf32>
    %158 = tpu.matmul %152, %7, %cst_63 {dimension_numbers = #tpu.dot_dimension_numbers<[1], [0], [0], [1], [0, 0, 1, 1], [], []>} : vector<16x2xf32>, vector<2x24xf32>, vector<16x24xf32> -> vector<16x24xf32>
    %cst_64 = arith.constant dense<0.000000e+00> : vector<16x24xf32>
    %159 = tpu.matmul %157, %7, %cst_64 {dimension_numbers = #tpu.dot_dimension_numbers<[1], [0], [0], [1], [0, 0, 1, 1], [], []>} : vector<16x2xf32>, vector<2x24xf32>, vector<16x24xf32> -> vector<16x24xf32>
    %160 = arith.mulf %133, %158 : vector<16x24xf32>
    %161 = arith.addf %160, %159 : vector<16x24xf32>
    %162 = vector.broadcast %134 : vector<16x1xf32> to vector<16x24xf32>
    %163 = arith.mulf %162, %161 : vector<16x24xf32>
    %164 = vector.broadcast %135 : vector<16x1xf32> to vector<16x24xf32>
    %165 = arith.addf %163, %164 : vector<16x24xf32>
    %c2_65 = arith.constant 2 : index
    %c20_66 = arith.constant 20 : index
    %166 = vector.load %arg2[%c2_65, %c20_66] : memref<32x21xf32, #tpu.memory_space<vmem>>, vector<1x1xf32>
    %cst_67 = arith.constant 0.000000e+00 : f32
    %167 = vector.broadcast %cst_67 : f32 to vector<16x24xf32>
    %168 = arith.cmpf oge, %165, %167 : vector<16x24xf32>
    %169 = vector.broadcast %166 : vector<1x1xf32> to vector<16x24xf32>
    %170 = arith.mulf %169, %165 : vector<16x24xf32>
    %171 = arith.select %168, %165, %170 : vector<16x24xi1>, vector<16x24xf32>
    %c0_68 = arith.constant 0 : index
    %c0_69 = arith.constant 0 : index
    %172 = vector.load %arg6[%c0_68, %c0_69] : memref<16x16xf32, #tpu.memory_space<vmem>>, vector<16x16xf32>
    %cst_70 = arith.constant dense<0.000000e+00> : vector<16x24xf32>
    %173 = tpu.matmul %172, %171, %cst_70 {dimension_numbers = #tpu.dot_dimension_numbers<[1], [0], [0], [1], [0, 0, 1, 1], [], []>} : vector<16x16xf32>, vector<16x24xf32>, vector<16x24xf32> -> vector<16x24xf32>
    %c0_71 = arith.constant 0 : index
    %c18 = arith.constant 18 : index
    %174 = vector.load %arg2[%c0_71, %c18] : memref<32x21xf32, #tpu.memory_space<vmem>>, vector<16x1xf32>
    %175 = vector.broadcast %174 : vector<16x1xf32> to vector<16x24xf32>
    %176 = arith.addf %173, %175 : vector<16x24xf32>
    %177 = arith.addf %176, %133 : vector<16x24xf32>
    %cst_72 = arith.constant 5.000000e-01 : f32
    %178 = vector.broadcast %cst_72 : f32 to vector<16x24xf32>
    %179 = arith.mulf %177, %178 : vector<16x24xf32>
    %c0_73 = arith.constant 0 : index
    %c12 = arith.constant 12 : index
    %180 = vector.load %arg2[%c0_73, %c12] : memref<32x21xf32, #tpu.memory_space<vmem>>, vector<16x1xf32>
    %c0_74 = arith.constant 0 : index
    %c13 = arith.constant 13 : index
    %181 = vector.load %arg2[%c0_74, %c13] : memref<32x21xf32, #tpu.memory_space<vmem>>, vector<16x1xf32>
    %c0_75 = arith.constant 0 : index
    %c14 = arith.constant 14 : index
    %182 = vector.load %arg2[%c0_75, %c14] : memref<32x21xf32, #tpu.memory_space<vmem>>, vector<16x1xf32>
    %cst_76 = arith.constant dense<0.000000e+00> : vector<16x2xf32>
    %183 = tpu.matmul %179, %15, %cst_76 {dimension_numbers = #tpu.dot_dimension_numbers<[1], [1], [0], [0], [0, 0, 1, 0], [], []>} : vector<16x24xf32>, vector<2x24xf32>, vector<16x2xf32> -> vector<16x2xf32>
    %184 = arith.mulf %179, %179 : vector<16x24xf32>
    %cst_77 = arith.constant dense<0.000000e+00> : vector<16x2xf32>
    %185 = tpu.matmul %184, %15, %cst_77 {dimension_numbers = #tpu.dot_dimension_numbers<[1], [1], [0], [0], [0, 0, 1, 0], [], []>} : vector<16x24xf32>, vector<2x24xf32>, vector<16x2xf32> -> vector<16x2xf32>
    %cst_78 = arith.constant 2.000000e+00 : f32
    %186 = vector.broadcast %cst_78 : f32 to vector<16x1xf32>
    %187 = arith.mulf %186, %182 : vector<16x1xf32>
    %188 = arith.mulf %182, %182 : vector<16x1xf32>
    %189 = arith.subf %187, %188 : vector<16x1xf32>
    %190 = arith.mulf %183, %183 : vector<16x2xf32>
    %191 = vector.broadcast %189 : vector<16x1xf32> to vector<16x2xf32>
    %192 = arith.mulf %191, %190 : vector<16x2xf32>
    %193 = arith.subf %185, %192 : vector<16x2xf32>
    %cst_79 = arith.constant 0.000000e+00 : f32
    %194 = vector.broadcast %cst_79 : f32 to vector<16x2xf32>
    %195 = arith.maximumf %193, %194 : vector<16x2xf32>
    %cst_80 = arith.constant 9.99999974E-6 : f32
    %196 = vector.broadcast %cst_80 : f32 to vector<16x2xf32>
    %197 = arith.addf %195, %196 : vector<16x2xf32>
    %198 = math.rsqrt %197 : vector<16x2xf32>
    %cst_81 = arith.constant 0.000000e+00 : f32
    %199 = vector.broadcast %cst_81 : f32 to vector<16x1xf32>
    %200 = arith.subf %199, %182 : vector<16x1xf32>
    %201 = vector.broadcast %200 : vector<16x1xf32> to vector<16x2xf32>
    %202 = arith.mulf %201, %183 : vector<16x2xf32>
    %203 = arith.mulf %202, %198 : vector<16x2xf32>
    %cst_82 = arith.constant dense<0.000000e+00> : vector<16x24xf32>
    %204 = tpu.matmul %198, %7, %cst_82 {dimension_numbers = #tpu.dot_dimension_numbers<[1], [0], [0], [1], [0, 0, 1, 1], [], []>} : vector<16x2xf32>, vector<2x24xf32>, vector<16x24xf32> -> vector<16x24xf32>
    %cst_83 = arith.constant dense<0.000000e+00> : vector<16x24xf32>
    %205 = tpu.matmul %203, %7, %cst_83 {dimension_numbers = #tpu.dot_dimension_numbers<[1], [0], [0], [1], [0, 0, 1, 1], [], []>} : vector<16x2xf32>, vector<2x24xf32>, vector<16x24xf32> -> vector<16x24xf32>
    %206 = arith.mulf %179, %204 : vector<16x24xf32>
    %207 = arith.addf %206, %205 : vector<16x24xf32>
    %208 = vector.broadcast %180 : vector<16x1xf32> to vector<16x24xf32>
    %209 = arith.mulf %208, %207 : vector<16x24xf32>
    %210 = vector.broadcast %181 : vector<16x1xf32> to vector<16x24xf32>
    %211 = arith.addf %209, %210 : vector<16x24xf32>
    %c3_84 = arith.constant 3 : index
    %c20_85 = arith.constant 20 : index
    %212 = vector.load %arg2[%c3_84, %c20_85] : memref<32x21xf32, #tpu.memory_space<vmem>>, vector<1x1xf32>
    %cst_86 = arith.constant 0.000000e+00 : f32
    %213 = vector.broadcast %cst_86 : f32 to vector<16x24xf32>
    %214 = arith.cmpf oge, %211, %213 : vector<16x24xf32>
    %215 = vector.broadcast %212 : vector<1x1xf32> to vector<16x24xf32>
    %216 = arith.mulf %215, %211 : vector<16x24xf32>
    %217 = arith.select %214, %211, %216 : vector<16x24xi1>, vector<16x24xf32>
    %c0_87 = arith.constant 0 : index
    %c0_88 = arith.constant 0 : index
    %218 = vector.load %arg7[%c0_87, %c0_88] : memref<32x16xf32, #tpu.memory_space<vmem>>, vector<32x16xf32>
    %cst_89 = arith.constant dense<0.000000e+00> : vector<32x24xf32>
    %219 = tpu.matmul %218, %217, %cst_89 {dimension_numbers = #tpu.dot_dimension_numbers<[1], [0], [0], [1], [0, 0, 1, 1], [], []>} : vector<32x16xf32>, vector<16x24xf32>, vector<32x24xf32> -> vector<32x24xf32>
    %c0_90 = arith.constant 0 : index
    %c19 = arith.constant 19 : index
    %220 = vector.load %arg2[%c0_90, %c19] : memref<32x21xf32, #tpu.memory_space<vmem>>, vector<32x1xf32>
    %221 = vector.broadcast %220 : vector<32x1xf32> to vector<32x24xf32>
    %222 = arith.addf %219, %221 : vector<32x24xf32>
    %223 = tpu.transpose %222, [1, 0] : vector<32x24xf32> -> vector<24x32xf32>
    %c0_91 = arith.constant 0 : index
    %c0_92 = arith.constant 0 : index
    %224 = vector.load %arg8[%c0_91, %c0_92] : memref<24x32xf32, #tpu.memory_space<vmem>>, vector<24x32xf32>
    tpu.vector_store %arg8[%c0_91, %c0_92], %223 {strides = array<i32>} : memref<24x32xf32, #tpu.memory_space<vmem>>, vector<24x32xf32>,
    return
  }
}

</mosaic_0001>

<llo_original>
// kernel: tpu_custom_call.1
$region0: #{tpu_custom_call.1}
  #allocation0 [shape = 'u32[]', space=smem, size = 0x4, offset = 0x4, fixed_abs, tag = 'smem constant byte address 0x4 - core index']
  #allocation1 [shape = 'u32[72,128]{1,0:T(1,128)}', space=vmem, size = 0x9000, scoped, tag = 'internal scratch']
  %s0 = inlined_call_operand.hbm [shape: s32[1,24], index: 0, kind: input, shape index: {}]
  %s1 = inlined_call_operand.vmem [shape: f32[24,32], index: 1, kind: input, shape index: {}]
  %s2 = inlined_call_operand.vmem [shape: f32[32,21], index: 2, kind: input, shape index: {}]
  %s3 = inlined_call_operand.vmem [shape: f32[16,32], index: 3, kind: input, shape index: {}]
  %s4 = inlined_call_operand.vmem [shape: f32[16,16], index: 4, kind: input, shape index: {}]
  %s5 = inlined_call_operand.vmem [shape: f32[16,16], index: 5, kind: input, shape index: {}]
  %s6 = inlined_call_operand.vmem [shape: f32[16,16], index: 6, kind: input, shape index: {}]
  %s7 = inlined_call_operand.vmem [shape: f32[32,16], index: 7, kind: input, shape index: {}]
  %s8 = inlined_call_operand.hbm [shape: f32[24,32], index: 8, kind: output, shape index: {}]
  %s9 = sld [smem:[#allocation0]]
  $region46: #{tpu_custom_call.1} parent=0
    _
  %s11 = ssub.s32 1, %s9
  %s12 = scalar_select 0, %s11, %s9
  $region1: #{tpu_custom_call.1} parent=0
    #allocation2 [shape = 'u8[512]{0}', space=vmem, size = 0x400, scoped, tag = 'input window, operand 0, single buffered']
    #allocation3 [shape = 's32[1]{0}', space=sflag, size = 0x4, scoped, tag = 'scoped memory for tpu_custom_call.1']
    #allocation4 [shape = 's32[1]{0}', space=sflag, size = 0x4, scoped, tag = 'scoped memory for tpu_custom_call.1']
    #allocation5 [shape = 'u8[12288]{0}', space=vmem, size = 0x3000, scoped, tag = 'output window, operand 0, single buffered']
    %13 = vsyncpa [#allocation3], 0
    %14 = vsyncpa [#allocation4], 0
    // Predicated region
    $region2: #{tpu_custom_call.1} parent=1 // pred_check
      _
    $region3: #{tpu_custom_call.1} parent=1 // pred_check_branch
      %16 = sbr.rel (0) target = $region5
    $region4: #{tpu_custom_call.1} parent=1 // pred_region
      %18 = vsyncadd [#allocation3], 0
      %s20 = sshll.u32 %s0, 4
      %s21 = int_to_ptr.hbm [resolvable:$true] %s20
      %s22 = sshll.u32 [#allocation2], 4
      %s23 = int_to_ptr.vmem [resolvable:$true] %s22
      %25 = dma.hbm_to_vmem [thread:$0]  %s21, 16, %s23, [#allocation3]
    $region5: #{tpu_custom_call.1} parent=1 // pred_fallthru
      _
    // Predicated region
    $region6: #{tpu_custom_call.1} parent=1 // pred_check
      _
    $region7: #{tpu_custom_call.1} parent=1 // pred_check_branch
      %27 = sbr.rel (0) target = $region9
    $region8: #{tpu_custom_call.1} parent=1 // pred_region
      _
    $region9: #{tpu_custom_call.1} parent=1 // pred_fallthru
      _
    // Predicated region
    $region10: #{tpu_custom_call.1} parent=1 // pred_check
      _
    $region11: #{tpu_custom_call.1} parent=1 // pred_check_branch
      %29 = sbr.rel (0) target = $region13
    $region12: #{tpu_custom_call.1} parent=1 // pred_region
      _
    $region13: #{tpu_custom_call.1} parent=1 // pred_fallthru
      _
    // Predicated region
    $region14: #{tpu_custom_call.1} parent=1 // pred_check
      _
    $region15: #{tpu_custom_call.1} parent=1 // pred_check_branch
      %31 = sbr.rel (0) target = $region17
    $region16: #{tpu_custom_call.1} parent=1 // pred_region
      _
    $region17: #{tpu_custom_call.1} parent=1 // pred_fallthru
      _
    // Predicated region
    $region18: #{tpu_custom_call.1} parent=1 // pred_check
      _
    $region19: #{tpu_custom_call.1} parent=1 // pred_check_branch
      %33 = sbr.rel (0) target = $region21
    $region20: #{tpu_custom_call.1} parent=1 // pred_region
      _
    $region21: #{tpu_custom_call.1} parent=1 // pred_fallthru
      _
    // Predicated region
    $region22: #{tpu_custom_call.1} parent=1 // pred_check
      _
    $region23: #{tpu_custom_call.1} parent=1 // pred_check_branch
      %35 = sbr.rel (0) target = $region25
    $region24: #{tpu_custom_call.1} parent=1 // pred_region
      _
    $region25: #{tpu_custom_call.1} parent=1 // pred_fallthru
      _
    // Predicated region
    $region26: #{tpu_custom_call.1} parent=1 // pred_check
      _
    $region27: #{tpu_custom_call.1} parent=1 // pred_check_branch
      %37 = sbr.rel (0) target = $region29
    $region28: #{tpu_custom_call.1} parent=1 // pred_region
      _
    $region29: #{tpu_custom_call.1} parent=1 // pred_fallthru
      _
    // Predicated region
    $region30: #{tpu_custom_call.1} parent=1 // pred_check
      _
    $region31: #{tpu_custom_call.1} parent=1 // pred_check_branch
      %39 = sbr.rel (0) target = $region33
    $region32: #{tpu_custom_call.1} parent=1 // pred_region
      _
    $region33: #{tpu_custom_call.1} parent=1 // pred_fallthru
      _
    // Predicated region
    $region34: #{tpu_custom_call.1} parent=1 // pred_check
      _
    $region35: #{tpu_custom_call.1} parent=1 // pred_check_branch
      %41 = sbr.rel (0) target = $region37
    $region36: #{tpu_custom_call.1} parent=1 // pred_region
      %43 = dma.done [#allocation3], 16
    $region37: #{tpu_custom_call.1} parent=1 // pred_fallthru
      _
    %v44 = vld [vmem:[%s1] sm:$0xff]
    %v45 = vld [vmem:[%s1 + $0x8] sm:$0xff]
    %v46 = vld [vmem:[%s1 + $0x10] sm:$0xff]
    %47 = vxpose.xlu0.b32.start [1/16] %v44, 128
    %48 = vxpose.xlu0.b32.cont [2/16] %v45, 128
    %49 = vxpose.xlu0.b32.cont [3/16] %v46, 128
    %50 = vxpose.xlu0.b32.cont [4/16] 0.0, 128
    %51 = vxpose.xlu0.b32.cont [5/16] 0.0, 128
    %52 = vxpose.xlu0.b32.cont [6/16] 0.0, 128
    %53 = vxpose.xlu0.b32.cont [7/16] 0.0, 128
    %54 = vxpose.xlu0.b32.cont [8/16] 0.0, 128
    %55 = vxpose.xlu0.b32.cont [9/16] 0.0, 128
    %56 = vxpose.xlu0.b32.cont [10/16] 0.0, 128
    %57 = vxpose.xlu0.b32.cont [11/16] 0.0, 128
    %58 = vxpose.xlu0.b32.cont [12/16] 0.0, 128
    %59 = vxpose.xlu0.b32.cont [13/16] 0.0, 128
    %60 = vxpose.xlu0.b32.cont [14/16] 0.0, 128
    %61 = vxpose.xlu0.b32.cont [15/16] 0.0, 128
    %62 = vxpose.xlu0.b32.end [16/16] 0.0, 128
    %v63 = vpop.trf.xlu0
    %v64 = vpop.trf.xlu0
    %v65 = vpop.trf.xlu0
    %v66 = vpop.trf.xlu0
    %v67 = vpop.trf.xlu0
    %v68 = vpop.trf.xlu0
    %v69 = vpop.trf.xlu0
    %v70 = vpop.trf.xlu0
    %v71 = vpop.trf.xlu0
    %v72 = vpop.trf.xlu0
    %v73 = vpop.trf.xlu0
    %v74 = vpop.trf.xlu0
    %v75 = vpop.trf.xlu0
    %v76 = vpop.trf.xlu0
    %v77 = vpop.trf.xlu0
    %v78 = vpop.trf.xlu0
    %v79 = vld [vmem:[#allocation2] sm:$0x1]
    %v80 = vlaneseq
    %v81 = vshrl.u32 %v80, 7
    %v82 = vperm.slane %v79, 0
    %vm83 = vcmp.eq.s32.totalorder %v81, %v82
    %v84 = vsel %vm83, 1, 0
    %v85 = vcvt.s32.f32 %v84
    %vm86 = vcmask 189440
    %v87 = vsel %vm86, %v85, 0.0
    %88 = vadd.xlane.f32.xlu0 %v87
    %v89 = vpop.xlane.xlu0 %88
    %v90 = vmax.f32 %v89, 1.0
    %v91 = vrcp.pop %v90
    %v92 = vmul.f32 %v90, %v91
    %v93 = vsub.f32 1.0, %v92
    %v94 = vmul.f32 %v91, %v93
    %v95 = vadd.f32 %v91, %v94
    %vm96 = vweird.f32 %v90
    %vm97 = vweird.f32 %v91
    %vm98 = vmor %vm96, %vm97
    %v99 = vsel %vm98, %v91, %v95
    %v100 = vand.u32 2147483647, %v90
    %vm101 = vcmp.eq.f32.partialorder %v100, 8.507059e+37
    %v102 = vand.u32 %v90, 2147483648
    %v103 = vor.u32 1.1754944e-38, %v102
    %v104 = vsel %vm101, %v103, %v99
    %v105 = vmul.f32 1.0, %v104
    %v106 = vmul.f32 %v85, %v105
    %v107 = vld [vmem:[%s2] sm:$0xff]
    %v108 = vld [vmem:[%s2 + $0x8] sm:$0xff]
    %v109 = vld [vmem:[%s2 + $0x10] sm:$0xff]
    %v110 = vld [vmem:[%s2 + $0x18] sm:$0xff]
    %vm111 = vcmask 195584
    %v113 = vsel %vm111, %v63, 0
    %v116 = vsel %vm111, %v64, 0
    %v119 = vsel %vm111, %v65, 0
    %v122 = vsel %vm111, %v66, 0
    %v125 = vsel %vm111, %v106, 0
    %127 = vmatpush.xpose.msra.mxu0 0.0
    %128 = vmatpush.xpose.msra.mxu0 0.0
    %129 = vmatpush.xpose.msra.mxu0 0.0
    %130 = vmatpush.xpose.msra.mxu0 0.0
    %131 = vmatpush.xpose.msra.mxu0 0.0
    %132 = vmatpush.xpose.msra.mxu0 0.0
    %133 = vmatpush.xpose.msra.mxu0 0.0
    %134 = vmatpush.xpose.msra.mxu0 0.0
    %135 = vmatpush.xpose.msra.mxu0 0.0
    %136 = vmatpush.xpose.msra.mxu0 0.0
    %137 = vmatpush.xpose.msra.mxu0 0.0
    %138 = vmatpush.xpose.msra.mxu0 0.0
    %139 = vmatpush.xpose.msra.mxu0 0.0
    %140 = vmatpush.xpose.msra.mxu0 0.0
    %141 = vmatpush.xpose.msra.mxu0 0.0
    %142 = vmatpush.xpose.msra.mxu0 %v125
    %143 = vmatmul.f32.gmra.mxu0 %v113
    %v144 = vpop.f32.mrf.mxu0
    %v145 = vadd.f32 0.0, %v144
    %146 = vmatmul.f32.gmra.mxu0 %v116
    %v147 = vpop.f32.mrf.mxu0
    %v148 = vadd.f32 0.0, %v147
    %149 = vmatmul.f32.gmra.mxu0 %v119
    %v150 = vpop.f32.mrf.mxu0
    %v151 = vadd.f32 0.0, %v150
    %152 = vmatmul.f32.gmra.mxu0 %v122
    %v153 = vpop.f32.mrf.mxu0
    %v154 = vadd.f32 0.0, %v153
    %155 = vdwg.mxu0
    %v156 = vmul.f32 %v63, %v63
    %v157 = vmul.f32 %v64, %v64
    %v158 = vmul.f32 %v65, %v65
    %v159 = vmul.f32 %v66, %v66
    %v161 = vsel %vm111, %v156, 0
    %v164 = vsel %vm111, %v157, 0
    %v167 = vsel %vm111, %v158, 0
    %v170 = vsel %vm111, %v159, 0
    %172 = vmatpush.xpose.msra.mxu0 0.0
    %173 = vmatpush.xpose.msra.mxu0 0.0
    %174 = vmatpush.xpose.msra.mxu0 0.0
    %175 = vmatpush.xpose.msra.mxu0 0.0
    %176 = vmatpush.xpose.msra.mxu0 0.0
    %177 = vmatpush.xpose.msra.mxu0 0.0
    %178 = vmatpush.xpose.msra.mxu0 0.0
    %179 = vmatpush.xpose.msra.mxu0 0.0
    %180 = vmatpush.xpose.msra.mxu0 0.0
    %181 = vmatpush.xpose.msra.mxu0 0.0
    %182 = vmatpush.xpose.msra.mxu0 0.0
    %183 = vmatpush.xpose.msra.mxu0 0.0
    %184 = vmatpush.xpose.msra.mxu0 0.0
    %185 = vmatpush.xpose.msra.mxu0 0.0
    %186 = vmatpush.xpose.msra.mxu0 0.0
    %187 = vmatpush.xpose.msra.mxu0 %v125
    %188 = vmatmul.f32.gmra.mxu0 %v161
    %v189 = vpop.f32.mrf.mxu0
    %v190 = vadd.f32 0.0, %v189
    %191 = vmatmul.f32.gmra.mxu0 %v164
    %v192 = vpop.f32.mrf.mxu0
    %v193 = vadd.f32 0.0, %v192
    %194 = vmatmul.f32.gmra.mxu0 %v167
    %v195 = vpop.f32.mrf.mxu0
    %v196 = vadd.f32 0.0, %v195
    %197 = vmatmul.f32.gmra.mxu0 %v170
    %v198 = vpop.f32.mrf.mxu0
    %v199 = vadd.f32 0.0, %v198
    %200 = vdwg.mxu0
    %v201 = vmul.f32 %v107, 2.0
    %v202 = vmul.f32 %v108, 2.0
    %v203 = vmul.f32 %v109, 2.0
    %v204 = vmul.f32 %v110, 2.0
    %v205 = vmul.f32 %v107, %v107
    %v206 = vmul.f32 %v108, %v108
    %v207 = vmul.f32 %v109, %v109
    %v208 = vmul.f32 %v110, %v110
    %v209 = vsub.f32 %v201, %v205
    %v210 = vsub.f32 %v202, %v206
    %v211 = vsub.f32 %v203, %v207
    %v212 = vsub.f32 %v204, %v208
    %v213 = vmul.f32 %v145, %v145
    %v214 = vmul.f32 %v148, %v148
    %v215 = vmul.f32 %v151, %v151
    %v216 = vmul.f32 %v154, %v154
    %218 = vset.pattern.permute.xlu0 2
    %219 = vperm.xlu0 %218, %v209
    %v220 = vpop.permute.xlu0 %219
    %223 = vset.pattern.permute.xlu0 2
    %224 = vperm.xlu0 %223, %v210
    %v225 = vpop.permute.xlu0 %224
    %228 = vset.pattern.permute.xlu0 2
    %229 = vperm.xlu0 %228, %v211
    %v230 = vpop.permute.xlu0 %229
    %233 = vset.pattern.permute.xlu0 2
    %234 = vperm.xlu0 %233, %v212
    %v235 = vpop.permute.xlu0 %234
    %v237 = vmul.f32 %v220, %v213
    %v238 = vmul.f32 %v225, %v214
    %v239 = vmul.f32 %v230, %v215
    %v240 = vmul.f32 %v235, %v216
    %v241 = vsub.f32 %v190, %v237
    %v242 = vsub.f32 %v193, %v238
    %v243 = vsub.f32 %v196, %v239
    %v244 = vsub.f32 %v199, %v240
    %v245 = vmax.f32 %v241, 0.0
    %v246 = vmax.f32 %v242, 0.0
    %v247 = vmax.f32 %v243, 0.0
    %v248 = vmax.f32 %v244, 0.0
    %v249 = vadd.f32 %v245, 1e-05
    %v250 = vadd.f32 %v246, 1e-05
    %v251 = vadd.f32 %v247, 1e-05
    %v252 = vadd.f32 %v248, 1e-05
    %v253 = vrsqrt.pop %v249
    %v254 = vmul.f32 %v253, %v249
    %v255 = vmul.f32 %v254, %v253
    %v256 = vmul.f32 0.5, %v255
    %v257 = vsub.f32 1.5, %v256
    %v258 = vmul.f32 %v253, %v257
    %vm259 = vweird.f32 %v249
    %vm260 = vweird.f32 %v253
    %vm261 = vmor %vm259, %vm260
    %v262 = vsel %vm261, %v253, %v258
    %v263 = vrsqrt.pop %v250
    %v264 = vmul.f32 %v263, %v250
    %v265 = vmul.f32 %v264, %v263
    %v266 = vmul.f32 0.5, %v265
    %v267 = vsub.f32 1.5, %v266
    %v268 = vmul.f32 %v263, %v267
    %vm269 = vweird.f32 %v250
    %vm270 = vweird.f32 %v263
    %vm271 = vmor %vm269, %vm270
    %v272 = vsel %vm271, %v263, %v268
    %v273 = vrsqrt.pop %v251
    %v274 = vmul.f32 %v273, %v251
    %v275 = vmul.f32 %v274, %v273
    %v276 = vmul.f32 0.5, %v275
    %v277 = vsub.f32 1.5, %v276
    %v278 = vmul.f32 %v273, %v277
    %vm279 = vweird.f32 %v251
    %vm280 = vweird.f32 %v273
    %vm281 = vmor %vm279, %vm280
    %v282 = vsel %vm281, %v273, %v278
    %v283 = vrsqrt.pop %v252
    %v284 = vmul.f32 %v283, %v252
    %v285 = vmul.f32 %v284, %v283
    %v286 = vmul.f32 0.5, %v285
    %v287 = vsub.f32 1.5, %v286
    %v288 = vmul.f32 %v283, %v287
    %vm289 = vweird.f32 %v252
    %vm290 = vweird.f32 %v283
    %vm291 = vmor %vm289, %vm290
    %v292 = vsel %vm291, %v283, %v288
    %v293 = vsub.f32 0.0, %v107
    %v294 = vsub.f32 0.0, %v108
    %v295 = vsub.f32 0.0, %v109
    %v296 = vsub.f32 0.0, %v110
    %298 = vset.pattern.permute.xlu0 2
    %299 = vperm.xlu0 %298, %v293
    %v300 = vpop.permute.xlu0 %299
    %303 = vset.pattern.permute.xlu0 2
    %304 = vperm.xlu0 %303, %v294
    %v305 = vpop.permute.xlu0 %304
    %308 = vset.pattern.permute.xlu0 2
    %309 = vperm.xlu0 %308, %v295
    %v310 = vpop.permute.xlu0 %309
    %313 = vset.pattern.permute.xlu0 2
    %314 = vperm.xlu0 %313, %v296
    %v315 = vpop.permute.xlu0 %314
    %v317 = vmul.f32 %v300, %v145
    %v318 = vmul.f32 %v305, %v148
    %v319 = vmul.f32 %v310, %v151
    %v320 = vmul.f32 %v315, %v154
    %v321 = vmul.f32 %v317, %v262
    %v322 = vmul.f32 %v318, %v272
    %v323 = vmul.f32 %v319, %v282
    %v324 = vmul.f32 %v320, %v292
    %vm325 = vcmask 15360
    %v327 = vsel %vm325, %v262, 0
    %v330 = vsel %vm325, %v272, 0
    %v333 = vsel %vm325, %v282, 0
    %v336 = vsel %vm325, %v292, 0
    %vm338 = vcmask 1041408
    %v340 = vsel %vm338, %v85, 0
    %342 = vmatpush.msra.mxu0 0.0
    %343 = vmatpush.msra.mxu0 0.0
    %344 = vmatpush.msra.mxu0 0.0
    %345 = vmatpush.msra.mxu0 0.0
    %346 = vmatpush.msra.mxu0 0.0
    %347 = vmatpush.msra.mxu0 0.0
    %348 = vmatpush.msra.mxu0 0.0
    %349 = vmatpush.msra.mxu0 0.0
    %350 = vmatpush.msra.mxu0 0.0
    %351 = vmatpush.msra.mxu0 0.0
    %352 = vmatpush.msra.mxu0 0.0
    %353 = vmatpush.msra.mxu0 0.0
    %354 = vmatpush.msra.mxu0 0.0
    %355 = vmatpush.msra.mxu0 0.0
    %356 = vmatpush.msra.mxu0 0.0
    %357 = vmatpush.msra.mxu0 %v340
    %358 = vmatmul.f32.gmra.mxu0 %v327
    %v359 = vpop.f32.mrf.mxu0
    %v360 = vadd.f32 0.0, %v359
    %361 = vmatmul.f32.gmra.mxu0 %v330
    %v362 = vpop.f32.mrf.mxu0
    %v363 = vadd.f32 0.0, %v362
    %364 = vmatmul.f32.gmra.mxu0 %v333
    %v365 = vpop.f32.mrf.mxu0
    %v366 = vadd.f32 0.0, %v365
    %367 = vmatmul.f32.gmra.mxu0 %v336
    %v368 = vpop.f32.mrf.mxu0
    %v369 = vadd.f32 0.0, %v368
    %370 = vdwg.mxu0
    %v372 = vsel %vm325, %v321, 0
    %v375 = vsel %vm325, %v322, 0
    %v378 = vsel %vm325, %v323, 0
    %v381 = vsel %vm325, %v324, 0
    %383 = vmatpush.msra.mxu0 0.0
    %384 = vmatpush.msra.mxu0 0.0
    %385 = vmatpush.msra.mxu0 0.0
    %386 = vmatpush.msra.mxu0 0.0
    %387 = vmatpush.msra.mxu0 0.0
    %388 = vmatpush.msra.mxu0 0.0
    %389 = vmatpush.msra.mxu0 0.0
    %390 = vmatpush.msra.mxu0 0.0
    %391 = vmatpush.msra.mxu0 0.0
    %392 = vmatpush.msra.mxu0 0.0
    %393 = vmatpush.msra.mxu0 0.0
    %394 = vmatpush.msra.mxu0 0.0
    %395 = vmatpush.msra.mxu0 0.0
    %396 = vmatpush.msra.mxu0 0.0
    %397 = vmatpush.msra.mxu0 0.0
    %398 = vmatpush.msra.mxu0 %v340
    %399 = vmatmul.f32.gmra.mxu0 %v372
    %v400 = vpop.f32.mrf.mxu0
    %v401 = vadd.f32 0.0, %v400
    %402 = vmatmul.f32.gmra.mxu0 %v375
    %v403 = vpop.f32.mrf.mxu0
    %v404 = vadd.f32 0.0, %v403
    %405 = vmatmul.f32.gmra.mxu0 %v378
    %v406 = vpop.f32.mrf.mxu0
    %v407 = vadd.f32 0.0, %v406
    %408 = vmatmul.f32.gmra.mxu0 %v381
    %v409 = vpop.f32.mrf.mxu0
    %v410 = vadd.f32 0.0, %v409
    %411 = vdwg.mxu0
    %v412 = vmul.f32 %v63, %v360
    %v413 = vmul.f32 %v64, %v363
    %v414 = vmul.f32 %v65, %v366
    %v415 = vmul.f32 %v66, %v369
    %v416 = vadd.f32 %v412, %v401
    %v417 = vadd.f32 %v413, %v404
    %v418 = vadd.f32 %v414, %v407
    %v419 = vadd.f32 %v415, %v410
    %421 = vset.pattern.permute.xlu0 0
    %422 = vperm.xlu0 %421, %v107
    %v423 = vpop.permute.xlu0 %422
    %426 = vset.pattern.permute.xlu0 0
    %427 = vperm.xlu0 %426, %v108
    %v428 = vpop.permute.xlu0 %427
    %431 = vset.pattern.permute.xlu0 0
    %432 = vperm.xlu0 %431, %v109
    %v433 = vpop.permute.xlu0 %432
    %436 = vset.pattern.permute.xlu0 0
    %437 = vperm.xlu0 %436, %v110
    %v438 = vpop.permute.xlu0 %437
    %v440 = vmul.f32 %v423, %v416
    %v441 = vmul.f32 %v428, %v417
    %v442 = vmul.f32 %v433, %v418
    %v443 = vmul.f32 %v438, %v419
    %444 = vset.pattern.permute.xlu0 1
    %445 = vperm.xlu0 %444, %v107
    %v446 = vpop.permute.xlu0 %445
    %448 = vset.pattern.permute.xlu0 1
    %449 = vperm.xlu0 %448, %v108
    %v450 = vpop.permute.xlu0 %449
    %452 = vset.pattern.permute.xlu0 1
    %453 = vperm.xlu0 %452, %v109
    %v454 = vpop.permute.xlu0 %453
    %456 = vset.pattern.permute.xlu0 1
    %457 = vperm.xlu0 %456, %v110
    %v458 = vpop.permute.xlu0 %457
    %v460 = vadd.f32 %v440, %v446
    %v461 = vadd.f32 %v441, %v450
    %v462 = vadd.f32 %v442, %v454
    %v463 = vadd.f32 %v443, %v458
    %v464 = vld [vmem:[%s3] sm:$0xff]
    %v465 = vld [vmem:[%s3 + $0x8] sm:$0xff]
    %v466 = vld [vmem:[%s2] sm:$0xff]
    %v467 = vld [vmem:[%s2 + $0x8] sm:$0xff]
    %469 = vset.pattern.permute.xlu0 15
    %470 = vperm.xlu0 %469, %v466
    %v471 = vpop.permute.xlu0 %470
    %474 = vset.pattern.permute.xlu0 15
    %475 = vperm.xlu0 %474, %v467
    %v476 = vpop.permute.xlu0 %475
    %vm478 = vcmask 261120
    %v480 = vsel %vm478, %v464, 0
    %v483 = vsel %vm478, %v465, 0
    %485 = vmatpush.msra.mxu0 0.0
    %486 = vmatpush.msra.mxu0 0.0
    %487 = vmatpush.msra.mxu0 0.0
    %488 = vmatpush.msra.mxu0 0.0
    %489 = vmatpush.msra.mxu0 0.0
    %490 = vmatpush.msra.mxu0 0.0
    %491 = vmatpush.msra.mxu0 0.0
    %492 = vmatpush.msra.mxu0 0.0
    %493 = vmatpush.msra.mxu0 0.0
    %494 = vmatpush.msra.mxu0 0.0
    %495 = vmatpush.msra.mxu0 0.0
    %496 = vmatpush.msra.mxu0 0.0
    %497 = vmatpush.msra.mxu0 %v463
    %498 = vmatpush.msra.mxu0 %v462
    %499 = vmatpush.msra.mxu0 %v461
    %500 = vmatpush.msra.mxu0 %v460
    %501 = vmatmul.f32.gmra.mxu0 %v480
    %v502 = vpop.f32.mrf.mxu0
    %v503 = vadd.f32 %v471, %v502
    %504 = vmatmul.f32.gmra.mxu0 %v483
    %v505 = vpop.f32.mrf.mxu0
    %v506 = vadd.f32 %v476, %v505
    %507 = vdwg.mxu0
    %v509 = vsel %vm111, %v503, 0
    %v512 = vsel %vm111, %v506, 0
    %514 = vmatpush.xpose.msra.mxu0 0.0
    %515 = vmatpush.xpose.msra.mxu0 0.0
    %516 = vmatpush.xpose.msra.mxu0 0.0
    %517 = vmatpush.xpose.msra.mxu0 0.0
    %518 = vmatpush.xpose.msra.mxu0 0.0
    %519 = vmatpush.xpose.msra.mxu0 0.0
    %520 = vmatpush.xpose.msra.mxu0 0.0
    %521 = vmatpush.xpose.msra.mxu0 0.0
    %522 = vmatpush.xpose.msra.mxu0 0.0
    %523 = vmatpush.xpose.msra.mxu0 0.0
    %524 = vmatpush.xpose.msra.mxu0 0.0
    %525 = vmatpush.xpose.msra.mxu0 0.0
    %526 = vmatpush.xpose.msra.mxu0 0.0
    %527 = vmatpush.xpose.msra.mxu0 0.0
    %528 = vmatpush.xpose.msra.mxu0 0.0
    %529 = vmatpush.xpose.msra.mxu0 %v125
    %530 = vmatmul.f32.gmra.mxu0 %v509
    %v531 = vpop.f32.mrf.mxu0
    %v532 = vadd.f32 0.0, %v531
    %533 = vmatmul.f32.gmra.mxu0 %v512
    %v534 = vpop.f32.mrf.mxu0
    %v535 = vadd.f32 0.0, %v534
    %536 = vdwg.mxu0
    %v537 = vmul.f32 %v503, %v503
    %v538 = vmul.f32 %v506, %v506
    %v540 = vsel %vm111, %v537, 0
    %v543 = vsel %vm111, %v538, 0
    %545 = vmatpush.xpose.msra.mxu0 0.0
    %546 = vmatpush.xpose.msra.mxu0 0.0
    %547 = vmatpush.xpose.msra.mxu0 0.0
    %548 = vmatpush.xpose.msra.mxu0 0.0
    %549 = vmatpush.xpose.msra.mxu0 0.0
    %550 = vmatpush.xpose.msra.mxu0 0.0
    %551 = vmatpush.xpose.msra.mxu0 0.0
    %552 = vmatpush.xpose.msra.mxu0 0.0
    %553 = vmatpush.xpose.msra.mxu0 0.0
    %554 = vmatpush.xpose.msra.mxu0 0.0
    %555 = vmatpush.xpose.msra.mxu0 0.0
    %556 = vmatpush.xpose.msra.mxu0 0.0
    %557 = vmatpush.xpose.msra.mxu0 0.0
    %558 = vmatpush.xpose.msra.mxu0 0.0
    %559 = vmatpush.xpose.msra.mxu0 0.0
    %560 = vmatpush.xpose.msra.mxu0 %v125
    %561 = vmatmul.f32.gmra.mxu0 %v540
    %v562 = vpop.f32.mrf.mxu0
    %v563 = vadd.f32 0.0, %v562
    %564 = vmatmul.f32.gmra.mxu0 %v543
    %v565 = vpop.f32.mrf.mxu0
    %v566 = vadd.f32 0.0, %v565
    %567 = vdwg.mxu0
    %v568 = vmul.f32 %v466, 2.0
    %v569 = vmul.f32 %v467, 2.0
    %v570 = vmul.f32 %v466, %v466
    %v571 = vmul.f32 %v467, %v467
    %v572 = vsub.f32 %v568, %v570
    %v573 = vsub.f32 %v569, %v571
    %v574 = vmul.f32 %v532, %v532
    %v575 = vmul.f32 %v535, %v535
    %577 = vset.pattern.permute.xlu0 5
    %578 = vperm.xlu0 %577, %v572
    %v579 = vpop.permute.xlu0 %578
    %582 = vset.pattern.permute.xlu0 5
    %583 = vperm.xlu0 %582, %v573
    %v584 = vpop.permute.xlu0 %583
    %v586 = vmul.f32 %v579, %v574
    %v587 = vmul.f32 %v584, %v575
    %v588 = vsub.f32 %v563, %v586
    %v589 = vsub.f32 %v566, %v587
    %v590 = vmax.f32 %v588, 0.0
    %v591 = vmax.f32 %v589, 0.0
    %v592 = vadd.f32 %v590, 1e-05
    %v593 = vadd.f32 %v591, 1e-05
    %v594 = vrsqrt.pop %v592
    %v595 = vmul.f32 %v594, %v592
    %v596 = vmul.f32 %v595, %v594
    %v597 = vmul.f32 0.5, %v596
    %v598 = vsub.f32 1.5, %v597
    %v599 = vmul.f32 %v594, %v598
    %vm600 = vweird.f32 %v592
    %vm601 = vweird.f32 %v594
    %vm602 = vmor %vm600, %vm601
    %v603 = vsel %vm602, %v594, %v599
    %v604 = vrsqrt.pop %v593
    %v605 = vmul.f32 %v604, %v593
    %v606 = vmul.f32 %v605, %v604
    %v607 = vmul.f32 0.5, %v606
    %v608 = vsub.f32 1.5, %v607
    %v609 = vmul.f32 %v604, %v608
    %vm610 = vweird.f32 %v593
    %vm611 = vweird.f32 %v604
    %vm612 = vmor %vm610, %vm611
    %v613 = vsel %vm612, %v604, %v609
    %v614 = vsub.f32 0.0, %v466
    %v615 = vsub.f32 0.0, %v467
    %617 = vset.pattern.permute.xlu0 5
    %618 = vperm.xlu0 %617, %v614
    %v619 = vpop.permute.xlu0 %618
    %622 = vset.pattern.permute.xlu0 5
    %623 = vperm.xlu0 %622, %v615
    %v624 = vpop.permute.xlu0 %623
    %v626 = vmul.f32 %v619, %v532
    %v627 = vmul.f32 %v624, %v535
    %v628 = vmul.f32 %v626, %v603
    %v629 = vmul.f32 %v627, %v613
    %v631 = vsel %vm325, %v603, 0
    %v634 = vsel %vm325, %v613, 0
    %636 = vmatpush.msra.mxu0 0.0
    %637 = vmatpush.msra.mxu0 0.0
    %638 = vmatpush.msra.mxu0 0.0
    %639 = vmatpush.msra.mxu0 0.0
    %640 = vmatpush.msra.mxu0 0.0
    %641 = vmatpush.msra.mxu0 0.0
    %642 = vmatpush.msra.mxu0 0.0
    %643 = vmatpush.msra.mxu0 0.0
    %644 = vmatpush.msra.mxu0 0.0
    %645 = vmatpush.msra.mxu0 0.0
    %646 = vmatpush.msra.mxu0 0.0
    %647 = vmatpush.msra.mxu0 0.0
    %648 = vmatpush.msra.mxu0 0.0
    %649 = vmatpush.msra.mxu0 0.0
    %650 = vmatpush.msra.mxu0 0.0
    %651 = vmatpush.msra.mxu0 %v340
    %652 = vmatmul.f32.gmra.mxu0 %v631
    %v653 = vpop.f32.mrf.mxu0
    %v654 = vadd.f32 0.0, %v653
    %655 = vmatmul.f32.gmra.mxu0 %v634
    %v656 = vpop.f32.mrf.mxu0
    %v657 = vadd.f32 0.0, %v656
    %658 = vdwg.mxu0
    %v660 = vsel %vm325, %v628, 0
    %v663 = vsel %vm325, %v629, 0
    %665 = vmatpush.msra.mxu0 0.0
    %666 = vmatpush.msra.mxu0 0.0
    %667 = vmatpush.msra.mxu0 0.0
    %668 = vmatpush.msra.mxu0 0.0
    %669 = vmatpush.msra.mxu0 0.0
    %670 = vmatpush.msra.mxu0 0.0
    %671 = vmatpush.msra.mxu0 0.0
    %672 = vmatpush.msra.mxu0 0.0
    %673 = vmatpush.msra.mxu0 0.0
    %674 = vmatpush.msra.mxu0 0.0
    %675 = vmatpush.msra.mxu0 0.0
    %676 = vmatpush.msra.mxu0 0.0
    %677 = vmatpush.msra.mxu0 0.0
    %678 = vmatpush.msra.mxu0 0.0
    %679 = vmatpush.msra.mxu0 0.0
    %680 = vmatpush.msra.mxu0 %v340
    %681 = vmatmul.f32.gmra.mxu0 %v660
    %v682 = vpop.f32.mrf.mxu0
    %v683 = vadd.f32 0.0, %v682
    %684 = vmatmul.f32.gmra.mxu0 %v663
    %v685 = vpop.f32.mrf.mxu0
    %v686 = vadd.f32 0.0, %v685
    %687 = vdwg.mxu0
    %v688 = vmul.f32 %v503, %v654
    %v689 = vmul.f32 %v506, %v657
    %v690 = vadd.f32 %v688, %v683
    %v691 = vadd.f32 %v689, %v686
    %692 = vset.pattern.permute.xlu0 3
    %693 = vperm.xlu0 %692, %v466
    %v694 = vpop.permute.xlu0 %693
    %696 = vset.pattern.permute.xlu0 3
    %697 = vperm.xlu0 %696, %v467
    %v698 = vpop.permute.xlu0 %697
    %v700 = vmul.f32 %v694, %v690
    %v701 = vmul.f32 %v698, %v691
    %702 = vset.pattern.permute.xlu0 4
    %703 = vperm.xlu0 %702, %v466
    %v704 = vpop.permute.xlu0 %703
    %706 = vset.pattern.permute.xlu0 4
    %707 = vperm.xlu0 %706, %v467
    %v708 = vpop.permute.xlu0 %707
    %v710 = vadd.f32 %v700, %v704
    %v711 = vadd.f32 %v701, %v708
    %v712 = vld [vmem:[%s2] sm:$0x1]
    %vm713 = vcmp.ge.f32.partialorder %v710, 0.0
    %vm714 = vcmp.ge.f32.partialorder %v711, 0.0
    %716 = vrot.lane.b32.xlu0 %v712, 108
    %v717 = vpop.permute.xlu0 %716
    %s718 = vtos %v717
    %v719 = vstv %s718
    %v721 = vmul.f32 %v719, %v710
    %v722 = vmul.f32 %v719, %v711
    %v723 = vsel %vm713, %v710, %v721
    %v724 = vsel %vm714, %v711, %v722
    %v725 = vld [vmem:[%s4] sm:$0xff]
    %v726 = vld [vmem:[%s4 + $0x8] sm:$0xff]
    %727 = vset.pattern.permute.xlu0 16
    %728 = vperm.xlu0 %727, %v466
    %v729 = vpop.permute.xlu0 %728
    %731 = vset.pattern.permute.xlu0 16
    %732 = vperm.xlu0 %731, %v467
    %v733 = vpop.permute.xlu0 %732
    %vm735 = vcmask 130048
    %v737 = vsel %vm735, %v725, 0
    %v740 = vsel %vm735, %v726, 0
    %742 = vmatpush.msra.mxu0 0.0
    %743 = vmatpush.msra.mxu0 0.0
    %744 = vmatpush.msra.mxu0 0.0
    %745 = vmatpush.msra.mxu0 0.0
    %746 = vmatpush.msra.mxu0 0.0
    %747 = vmatpush.msra.mxu0 0.0
    %748 = vmatpush.msra.mxu0 0.0
    %749 = vmatpush.msra.mxu0 0.0
    %750 = vmatpush.msra.mxu0 0.0
    %751 = vmatpush.msra.mxu0 0.0
    %752 = vmatpush.msra.mxu0 0.0
    %753 = vmatpush.msra.mxu0 0.0
    %754 = vmatpush.msra.mxu0 0.0
    %755 = vmatpush.msra.mxu0 0.0
    %756 = vmatpush.msra.mxu0 %v724
    %757 = vmatpush.msra.mxu0 %v723
    %758 = vmatmul.f32.gmra.mxu0 %v737
    %v759 = vpop.f32.mrf.mxu0
    %v760 = vadd.f32 %v729, %v759
    %761 = vmatmul.f32.gmra.mxu0 %v740
    %v762 = vpop.f32.mrf.mxu0
    %v763 = vadd.f32 %v733, %v762
    %764 = vdwg.mxu0
    %v765 = vsel %vm111, %v760, 0.0
    %766 = vadd.xlane.f32.xlu0 %v765
    %v767 = vpop.xlane.xlu0 %766
    %v768 = vsel %vm111, %v763, 0.0
    %769 = vadd.xlane.f32.xlu0 %v768
    %v770 = vpop.xlane.xlu0 %769
    %v771 = vrcp.pop 24.0
    %v772 = vmul.f32 24.0, %v771
    %v773 = vsub.f32 1.0, %v772
    %v774 = vmul.f32 %v771, %v773
    %v775 = vadd.f32 %v771, %v774
    %vm776 = vweird.f32 %v771
    %v777 = vsel %vm776, %v771, %v775
    %v778 = vmul.f32 %v767, %v777
    %v779 = vmul.f32 %v770, %v777
    %v780 = vmul.f32 %v466, %v778
    %v781 = vmul.f32 %v467, %v779
    %783 = vset.pattern.permute.xlu0 8
    %784 = vperm.xlu0 %783, %v780
    %v785 = vpop.permute.xlu0 %784
    %788 = vset.pattern.permute.xlu0 8
    %789 = vperm.xlu0 %788, %v781
    %v790 = vpop.permute.xlu0 %789
    %v792 = vsub.f32 %v760, %v785
    %v793 = vsub.f32 %v763, %v790
    %v794 = vmul.f32 %v792, %v792
    %v795 = vmul.f32 %v793, %v793
    %v796 = vsel %vm111, %v794, 0.0
    %797 = vadd.xlane.f32.xlu0 %v796
    %v798 = vpop.xlane.xlu0 %797
    %v799 = vsel %vm111, %v795, 0.0
    %800 = vadd.xlane.f32.xlu0 %v799
    %v801 = vpop.xlane.xlu0 %800
    %v802 = vmul.f32 %v798, %v777
    %v803 = vmul.f32 %v801, %v777
    %804 = vset.pattern.permute.xlu0 6
    %805 = vperm.xlu0 %804, %v466
    %v806 = vpop.permute.xlu0 %805
    %808 = vset.pattern.permute.xlu0 6
    %809 = vperm.xlu0 %808, %v467
    %v810 = vpop.permute.xlu0 %809
    %v812 = vmul.f32 %v806, %v792
    %v813 = vmul.f32 %v810, %v793
    %v814 = vadd.f32 %v802, 1e-05
    %v815 = vadd.f32 %v803, 1e-05
    %v816 = vrsqrt.pop %v814
    %v817 = vmul.f32 %v816, %v814
    %v818 = vmul.f32 %v817, %v816
    %v819 = vmul.f32 0.5, %v818
    %v820 = vsub.f32 1.5, %v819
    %v821 = vmul.f32 %v816, %v820
    %vm822 = vweird.f32 %v814
    %vm823 = vweird.f32 %v816
    %vm824 = vmor %vm822, %vm823
    %v825 = vsel %vm824, %v816, %v821
    %v826 = vrsqrt.pop %v815
    %v827 = vmul.f32 %v826, %v815
    %v828 = vmul.f32 %v827, %v826
    %v829 = vmul.f32 0.5, %v828
    %v830 = vsub.f32 1.5, %v829
    %v831 = vmul.f32 %v826, %v830
    %vm832 = vweird.f32 %v815
    %vm833 = vweird.f32 %v826
    %vm834 = vmor %vm832, %vm833
    %v835 = vsel %vm834, %v826, %v831
    %v836 = vmul.f32 %v812, %v825
    %v837 = vmul.f32 %v813, %v835
    %838 = vset.pattern.permute.xlu0 7
    %839 = vperm.xlu0 %838, %v466
    %v840 = vpop.permute.xlu0 %839
    %842 = vset.pattern.permute.xlu0 7
    %843 = vperm.xlu0 %842, %v467
    %v844 = vpop.permute.xlu0 %843
    %v846 = vadd.f32 %v836, %v840
    %v847 = vadd.f32 %v837, %v844
    %v848 = vld [vmem:[%s2 + $0x1] sm:$0x1]
    %vm849 = vcmp.ge.f32.partialorder %v846, 0.0
    %vm850 = vcmp.ge.f32.partialorder %v847, 0.0
    %852 = vrot.lane.b32.xlu0 %v848, 108
    %v853 = vpop.permute.xlu0 %852
    %s854 = vtos %v853
    %v855 = vstv %s854
    %v857 = vmul.f32 %v855, %v846
    %v858 = vmul.f32 %v855, %v847
    %v859 = vsel %vm849, %v846, %v857
    %v860 = vsel %vm850, %v847, %v858
    %v861 = vld [vmem:[%s5] sm:$0xff]
    %v862 = vld [vmem:[%s5 + $0x8] sm:$0xff]
    %863 = vset.pattern.permute.xlu0 17
    %864 = vperm.xlu0 %863, %v466
    %v865 = vpop.permute.xlu0 %864
    %867 = vset.pattern.permute.xlu0 17
    %868 = vperm.xlu0 %867, %v467
    %v869 = vpop.permute.xlu0 %868
    %v872 = vsel %vm735, %v861, 0
    %v875 = vsel %vm735, %v862, 0
    %877 = vmatpush.msra.mxu0 0.0
    %878 = vmatpush.msra.mxu0 0.0
    %879 = vmatpush.msra.mxu0 0.0
    %880 = vmatpush.msra.mxu0 0.0
    %881 = vmatpush.msra.mxu0 0.0
    %882 = vmatpush.msra.mxu0 0.0
    %883 = vmatpush.msra.mxu0 0.0
    %884 = vmatpush.msra.mxu0 0.0
    %885 = vmatpush.msra.mxu0 0.0
    %886 = vmatpush.msra.mxu0 0.0
    %887 = vmatpush.msra.mxu0 0.0
    %888 = vmatpush.msra.mxu0 0.0
    %889 = vmatpush.msra.mxu0 0.0
    %890 = vmatpush.msra.mxu0 0.0
    %891 = vmatpush.msra.mxu0 %v860
    %892 = vmatpush.msra.mxu0 %v859
    %893 = vmatmul.f32.gmra.mxu0 %v872
    %v894 = vpop.f32.mrf.mxu0
    %v895 = vadd.f32 %v865, %v894
    %896 = vmatmul.f32.gmra.mxu0 %v875
    %v897 = vpop.f32.mrf.mxu0
    %v898 = vadd.f32 %v869, %v897
    %899 = vdwg.mxu0
    %v900 = vadd.f32 %v895, %v503
    %v901 = vadd.f32 %v898, %v506
    %v902 = vmul.f32 %v900, 0.5
    %v903 = vmul.f32 %v901, 0.5
    %v905 = vsel %vm111, %v902, 0
    %v908 = vsel %vm111, %v903, 0
    %910 = vmatpush.xpose.msra.mxu0 0.0
    %911 = vmatpush.xpose.msra.mxu0 0.0
    %912 = vmatpush.xpose.msra.mxu0 0.0
    %913 = vmatpush.xpose.msra.mxu0 0.0
    %914 = vmatpush.xpose.msra.mxu0 0.0
    %915 = vmatpush.xpose.msra.mxu0 0.0
    %916 = vmatpush.xpose.msra.mxu0 0.0
    %917 = vmatpush.xpose.msra.mxu0 0.0
    %918 = vmatpush.xpose.msra.mxu0 0.0
    %919 = vmatpush.xpose.msra.mxu0 0.0
    %920 = vmatpush.xpose.msra.mxu0 0.0
    %921 = vmatpush.xpose.msra.mxu0 0.0
    %922 = vmatpush.xpose.msra.mxu0 0.0
    %923 = vmatpush.xpose.msra.mxu0 0.0
    %924 = vmatpush.xpose.msra.mxu0 0.0
    %925 = vmatpush.xpose.msra.mxu0 %v125
    %926 = vmatmul.f32.gmra.mxu0 %v905
    %v927 = vpop.f32.mrf.mxu0
    %v928 = vadd.f32 0.0, %v927
    %929 = vmatmul.f32.gmra.mxu0 %v908
    %v930 = vpop.f32.mrf.mxu0
    %v931 = vadd.f32 0.0, %v930
    %932 = vdwg.mxu0
    %v933 = vmul.f32 %v902, %v902
    %v934 = vmul.f32 %v903, %v903
    %v936 = vsel %vm111, %v933, 0
    %v939 = vsel %vm111, %v934, 0
    %941 = vmatpush.xpose.msra.mxu0 0.0
    %942 = vmatpush.xpose.msra.mxu0 0.0
    %943 = vmatpush.xpose.msra.mxu0 0.0
    %944 = vmatpush.xpose.msra.mxu0 0.0
    %945 = vmatpush.xpose.msra.mxu0 0.0
    %946 = vmatpush.xpose.msra.mxu0 0.0
    %947 = vmatpush.xpose.msra.mxu0 0.0
    %948 = vmatpush.xpose.msra.mxu0 0.0
    %949 = vmatpush.xpose.msra.mxu0 0.0
    %950 = vmatpush.xpose.msra.mxu0 0.0
    %951 = vmatpush.xpose.msra.mxu0 0.0
    %952 = vmatpush.xpose.msra.mxu0 0.0
    %953 = vmatpush.xpose.msra.mxu0 0.0
    %954 = vmatpush.xpose.msra.mxu0 0.0
    %955 = vmatpush.xpose.msra.mxu0 0.0
    %956 = vmatpush.xpose.msra.mxu0 %v125
    %957 = vmatmul.f32.gmra.mxu0 %v936
    %v958 = vpop.f32.mrf.mxu0
    %v959 = vadd.f32 0.0, %v958
    %960 = vmatmul.f32.gmra.mxu0 %v939
    %v961 = vpop.f32.mrf.mxu0
    %v962 = vadd.f32 0.0, %v961
    %963 = vdwg.mxu0
    %v964 = vmul.f32 %v928, %v928
    %v965 = vmul.f32 %v931, %v931
    %966 = vset.pattern.permute.xlu0 11
    %967 = vperm.xlu0 %966, %v572
    %v968 = vpop.permute.xlu0 %967
    %970 = vset.pattern.permute.xlu0 11
    %971 = vperm.xlu0 %970, %v573
    %v972 = vpop.permute.xlu0 %971
    %v974 = vmul.f32 %v968, %v964
    %v975 = vmul.f32 %v972, %v965
    %v976 = vsub.f32 %v959, %v974
    %v977 = vsub.f32 %v962, %v975
    %v978 = vmax.f32 %v976, 0.0
    %v979 = vmax.f32 %v977, 0.0
    %v980 = vadd.f32 %v978, 1e-05
    %v981 = vadd.f32 %v979, 1e-05
    %v982 = vrsqrt.pop %v980
    %v983 = vmul.f32 %v982, %v980
    %v984 = vmul.f32 %v983, %v982
    %v985 = vmul.f32 0.5, %v984
    %v986 = vsub.f32 1.5, %v985
    %v987 = vmul.f32 %v982, %v986
    %vm988 = vweird.f32 %v980
    %vm989 = vweird.f32 %v982
    %vm990 = vmor %vm988, %vm989
    %v991 = vsel %vm990, %v982, %v987
    %v992 = vrsqrt.pop %v981
    %v993 = vmul.f32 %v992, %v981
    %v994 = vmul.f32 %v993, %v992
    %v995 = vmul.f32 0.5, %v994
    %v996 = vsub.f32 1.5, %v995
    %v997 = vmul.f32 %v992, %v996
    %vm998 = vweird.f32 %v981
    %vm999 = vweird.f32 %v992
    %vm1000 = vmor %vm998, %vm999
    %v1001 = vsel %vm1000, %v992, %v997
    %1002 = vset.pattern.permute.xlu0 11
    %1003 = vperm.xlu0 %1002, %v614
    %v1004 = vpop.permute.xlu0 %1003
    %1006 = vset.pattern.permute.xlu0 11
    %1007 = vperm.xlu0 %1006, %v615
    %v1008 = vpop.permute.xlu0 %1007
    %v1010 = vmul.f32 %v1004, %v928
    %v1011 = vmul.f32 %v1008, %v931
    %v1012 = vmul.f32 %v1010, %v991
    %v1013 = vmul.f32 %v1011, %v1001
    %v1015 = vsel %vm325, %v991, 0
    %v1018 = vsel %vm325, %v1001, 0
    %1020 = vmatpush.msra.mxu0 0.0
    %1021 = vmatpush.msra.mxu0 0.0
    %1022 = vmatpush.msra.mxu0 0.0
    %1023 = vmatpush.msra.mxu0 0.0
    %1024 = vmatpush.msra.mxu0 0.0
    %1025 = vmatpush.msra.mxu0 0.0
    %1026 = vmatpush.msra.mxu0 0.0
    %1027 = vmatpush.msra.mxu0 0.0
    %1028 = vmatpush.msra.mxu0 0.0
    %1029 = vmatpush.msra.mxu0 0.0
    %1030 = vmatpush.msra.mxu0 0.0
    %1031 = vmatpush.msra.mxu0 0.0
    %1032 = vmatpush.msra.mxu0 0.0
    %1033 = vmatpush.msra.mxu0 0.0
    %1034 = vmatpush.msra.mxu0 0.0
    %1035 = vmatpush.msra.mxu0 %v340
    %1036 = vmatmul.f32.gmra.mxu0 %v1015
    %v1037 = vpop.f32.mrf.mxu0
    %v1038 = vadd.f32 0.0, %v1037
    %1039 = vmatmul.f32.gmra.mxu0 %v1018
    %v1040 = vpop.f32.mrf.mxu0
    %v1041 = vadd.f32 0.0, %v1040
    %1042 = vdwg.mxu0
    %v1044 = vsel %vm325, %v1012, 0
    %v1047 = vsel %vm325, %v1013, 0
    %1049 = vmatpush.msra.mxu0 0.0
    %1050 = vmatpush.msra.mxu0 0.0
    %1051 = vmatpush.msra.mxu0 0.0
    %1052 = vmatpush.msra.mxu0 0.0
    %1053 = vmatpush.msra.mxu0 0.0
    %1054 = vmatpush.msra.mxu0 0.0
    %1055 = vmatpush.msra.mxu0 0.0
    %1056 = vmatpush.msra.mxu0 0.0
    %1057 = vmatpush.msra.mxu0 0.0
    %1058 = vmatpush.msra.mxu0 0.0
    %1059 = vmatpush.msra.mxu0 0.0
    %1060 = vmatpush.msra.mxu0 0.0
    %1061 = vmatpush.msra.mxu0 0.0
    %1062 = vmatpush.msra.mxu0 0.0
    %1063 = vmatpush.msra.mxu0 0.0
    %1064 = vmatpush.msra.mxu0 %v340
    %1065 = vmatmul.f32.gmra.mxu0 %v1044
    %v1066 = vpop.f32.mrf.mxu0
    %v1067 = vadd.f32 0.0, %v1066
    %1068 = vmatmul.f32.gmra.mxu0 %v1047
    %v1069 = vpop.f32.mrf.mxu0
    %v1070 = vadd.f32 0.0, %v1069
    %1071 = vdwg.mxu0
    %v1072 = vmul.f32 %v902, %v1038
    %v1073 = vmul.f32 %v903, %v1041
    %v1074 = vadd.f32 %v1072, %v1067
    %v1075 = vadd.f32 %v1073, %v1070
    %1076 = vset.pattern.permute.xlu0 9
    %1077 = vperm.xlu0 %1076, %v466
    %v1078 = vpop.permute.xlu0 %1077
    %1080 = vset.pattern.permute.xlu0 9
    %1081 = vperm.xlu0 %1080, %v467
    %v1082 = vpop.permute.xlu0 %1081
    %v1084 = vmul.f32 %v1078, %v1074
    %v1085 = vmul.f32 %v1082, %v1075
    %1086 = vset.pattern.permute.xlu0 10
    %1087 = vperm.xlu0 %1086, %v466
    %v1088 = vpop.permute.xlu0 %1087
    %1090 = vset.pattern.permute.xlu0 10
    %1091 = vperm.xlu0 %1090, %v467
    %v1092 = vpop.permute.xlu0 %1091
    %v1094 = vadd.f32 %v1084, %v1088
    %v1095 = vadd.f32 %v1085, %v1092
    %v1096 = vld [vmem:[%s2 + $0x2] sm:$0x1]
    %vm1097 = vcmp.ge.f32.partialorder %v1094, 0.0
    %vm1098 = vcmp.ge.f32.partialorder %v1095, 0.0
    %1100 = vrot.lane.b32.xlu0 %v1096, 108
    %v1101 = vpop.permute.xlu0 %1100
    %s1102 = vtos %v1101
    %v1103 = vstv %s1102
    %v1105 = vmul.f32 %v1103, %v1094
    %v1106 = vmul.f32 %v1103, %v1095
    %v1107 = vsel %vm1097, %v1094, %v1105
    %v1108 = vsel %vm1098, %v1095, %v1106
    %v1109 = vld [vmem:[%s6] sm:$0xff]
    %v1110 = vld [vmem:[%s6 + $0x8] sm:$0xff]
    %1111 = vset.pattern.permute.xlu0 18
    %1112 = vperm.xlu0 %1111, %v466
    %v1113 = vpop.permute.xlu0 %1112
    %1115 = vset.pattern.permute.xlu0 18
    %1116 = vperm.xlu0 %1115, %v467
    %v1117 = vpop.permute.xlu0 %1116
    %v1120 = vsel %vm735, %v1109, 0
    %v1123 = vsel %vm735, %v1110, 0
    %1125 = vmatpush.msra.mxu0 0.0
    %1126 = vmatpush.msra.mxu0 0.0
    %1127 = vmatpush.msra.mxu0 0.0
    %1128 = vmatpush.msra.mxu0 0.0
    %1129 = vmatpush.msra.mxu0 0.0
    %1130 = vmatpush.msra.mxu0 0.0
    %1131 = vmatpush.msra.mxu0 0.0
    %1132 = vmatpush.msra.mxu0 0.0
    %1133 = vmatpush.msra.mxu0 0.0
    %1134 = vmatpush.msra.mxu0 0.0
    %1135 = vmatpush.msra.mxu0 0.0
    %1136 = vmatpush.msra.mxu0 0.0
    %1137 = vmatpush.msra.mxu0 0.0
    %1138 = vmatpush.msra.mxu0 0.0
    %1139 = vmatpush.msra.mxu0 %v1108
    %1140 = vmatpush.msra.mxu0 %v1107
    %1141 = vmatmul.f32.gmra.mxu0 %v1120
    %v1142 = vpop.f32.mrf.mxu0
    %v1143 = vadd.f32 %v1113, %v1142
    %1144 = vmatmul.f32.gmra.mxu0 %v1123
    %v1145 = vpop.f32.mrf.mxu0
    %v1146 = vadd.f32 %v1117, %v1145
    %1147 = vdwg.mxu0
    %v1148 = vadd.f32 %v1143, %v902
    %v1149 = vadd.f32 %v1146, %v903
    %v1150 = vmul.f32 %v1148, 0.5
    %v1151 = vmul.f32 %v1149, 0.5
    %v1153 = vsel %vm111, %v1150, 0
    %v1156 = vsel %vm111, %v1151, 0
    %1158 = vmatpush.xpose.msra.mxu0 0.0
    %1159 = vmatpush.xpose.msra.mxu0 0.0
    %1160 = vmatpush.xpose.msra.mxu0 0.0
    %1161 = vmatpush.xpose.msra.mxu0 0.0
    %1162 = vmatpush.xpose.msra.mxu0 0.0
    %1163 = vmatpush.xpose.msra.mxu0 0.0
    %1164 = vmatpush.xpose.msra.mxu0 0.0
    %1165 = vmatpush.xpose.msra.mxu0 0.0
    %1166 = vmatpush.xpose.msra.mxu0 0.0
    %1167 = vmatpush.xpose.msra.mxu0 0.0
    %1168 = vmatpush.xpose.msra.mxu0 0.0
    %1169 = vmatpush.xpose.msra.mxu0 0.0
    %1170 = vmatpush.xpose.msra.mxu0 0.0
    %1171 = vmatpush.xpose.msra.mxu0 0.0
    %1172 = vmatpush.xpose.msra.mxu0 0.0
    %1173 = vmatpush.xpose.msra.mxu0 %v125
    %1174 = vmatmul.f32.gmra.mxu0 %v1153
    %v1175 = vpop.f32.mrf.mxu0
    %v1176 = vadd.f32 0.0, %v1175
    %1177 = vmatmul.f32.gmra.mxu0 %v1156
    %v1178 = vpop.f32.mrf.mxu0
    %v1179 = vadd.f32 0.0, %v1178
    %1180 = vdwg.mxu0
    %v1181 = vmul.f32 %v1150, %v1150
    %v1182 = vmul.f32 %v1151, %v1151
    %v1184 = vsel %vm111, %v1181, 0
    %v1187 = vsel %vm111, %v1182, 0
    %1189 = vmatpush.xpose.msra.mxu0 0.0
    %1190 = vmatpush.xpose.msra.mxu0 0.0
    %1191 = vmatpush.xpose.msra.mxu0 0.0
    %1192 = vmatpush.xpose.msra.mxu0 0.0
    %1193 = vmatpush.xpose.msra.mxu0 0.0
    %1194 = vmatpush.xpose.msra.mxu0 0.0
    %1195 = vmatpush.xpose.msra.mxu0 0.0
    %1196 = vmatpush.xpose.msra.mxu0 0.0
    %1197 = vmatpush.xpose.msra.mxu0 0.0
    %1198 = vmatpush.xpose.msra.mxu0 0.0
    %1199 = vmatpush.xpose.msra.mxu0 0.0
    %1200 = vmatpush.xpose.msra.mxu0 0.0
    %1201 = vmatpush.xpose.msra.mxu0 0.0
    %1202 = vmatpush.xpose.msra.mxu0 0.0
    %1203 = vmatpush.xpose.msra.mxu0 0.0
    %1204 = vmatpush.xpose.msra.mxu0 %v125
    %1205 = vmatmul.f32.gmra.mxu0 %v1184
    %v1206 = vpop.f32.mrf.mxu0
    %v1207 = vadd.f32 0.0, %v1206
    %1208 = vmatmul.f32.gmra.mxu0 %v1187
    %v1209 = vpop.f32.mrf.mxu0
    %v1210 = vadd.f32 0.0, %v1209
    %1211 = vdwg.mxu0
    %v1212 = vmul.f32 %v1176, %v1176
    %v1213 = vmul.f32 %v1179, %v1179
    %1214 = vset.pattern.permute.xlu0 14
    %1215 = vperm.xlu0 %1214, %v572
    %v1216 = vpop.permute.xlu0 %1215
    %1218 = vset.pattern.permute.xlu0 14
    %1219 = vperm.xlu0 %1218, %v573
    %v1220 = vpop.permute.xlu0 %1219
    %v1222 = vmul.f32 %v1216, %v1212
    %v1223 = vmul.f32 %v1220, %v1213
    %v1224 = vsub.f32 %v1207, %v1222
    %v1225 = vsub.f32 %v1210, %v1223
    %v1226 = vmax.f32 %v1224, 0.0
    %v1227 = vmax.f32 %v1225, 0.0
    %v1228 = vadd.f32 %v1226, 1e-05
    %v1229 = vadd.f32 %v1227, 1e-05
    %v1230 = vrsqrt.pop %v1228
    %v1231 = vmul.f32 %v1230, %v1228
    %v1232 = vmul.f32 %v1231, %v1230
    %v1233 = vmul.f32 0.5, %v1232
    %v1234 = vsub.f32 1.5, %v1233
    %v1235 = vmul.f32 %v1230, %v1234
    %vm1236 = vweird.f32 %v1228
    %vm1237 = vweird.f32 %v1230
    %vm1238 = vmor %vm1236, %vm1237
    %v1239 = vsel %vm1238, %v1230, %v1235
    %v1240 = vrsqrt.pop %v1229
    %v1241 = vmul.f32 %v1240, %v1229
    %v1242 = vmul.f32 %v1241, %v1240
    %v1243 = vmul.f32 0.5, %v1242
    %v1244 = vsub.f32 1.5, %v1243
    %v1245 = vmul.f32 %v1240, %v1244
    %vm1246 = vweird.f32 %v1229
    %vm1247 = vweird.f32 %v1240
    %vm1248 = vmor %vm1246, %vm1247
    %v1249 = vsel %vm1248, %v1240, %v1245
    %1250 = vset.pattern.permute.xlu0 14
    %1251 = vperm.xlu0 %1250, %v614
    %v1252 = vpop.permute.xlu0 %1251
    %1254 = vset.pattern.permute.xlu0 14
    %1255 = vperm.xlu0 %1254, %v615
    %v1256 = vpop.permute.xlu0 %1255
    %v1258 = vmul.f32 %v1252, %v1176
    %v1259 = vmul.f32 %v1256, %v1179
    %v1260 = vmul.f32 %v1258, %v1239
    %v1261 = vmul.f32 %v1259, %v1249
    %v1263 = vsel %vm325, %v1239, 0
    %v1266 = vsel %vm325, %v1249, 0
    %1268 = vmatpush.msra.mxu0 0.0
    %1269 = vmatpush.msra.mxu0 0.0
    %1270 = vmatpush.msra.mxu0 0.0
    %1271 = vmatpush.msra.mxu0 0.0
    %1272 = vmatpush.msra.mxu0 0.0
    %1273 = vmatpush.msra.mxu0 0.0
    %1274 = vmatpush.msra.mxu0 0.0
    %1275 = vmatpush.msra.mxu0 0.0
    %1276 = vmatpush.msra.mxu0 0.0
    %1277 = vmatpush.msra.mxu0 0.0
    %1278 = vmatpush.msra.mxu0 0.0
    %1279 = vmatpush.msra.mxu0 0.0
    %1280 = vmatpush.msra.mxu0 0.0
    %1281 = vmatpush.msra.mxu0 0.0
    %1282 = vmatpush.msra.mxu0 0.0
    %1283 = vmatpush.msra.mxu0 %v340
    %1284 = vmatmul.f32.gmra.mxu0 %v1263
    %v1285 = vpop.f32.mrf.mxu0
    %v1286 = vadd.f32 0.0, %v1285
    %1287 = vmatmul.f32.gmra.mxu0 %v1266
    %v1288 = vpop.f32.mrf.mxu0
    %v1289 = vadd.f32 0.0, %v1288
    %1290 = vdwg.mxu0
    %v1292 = vsel %vm325, %v1260, 0
    %v1295 = vsel %vm325, %v1261, 0
    %1297 = vmatpush.msra.mxu0 0.0
    %1298 = vmatpush.msra.mxu0 0.0
    %1299 = vmatpush.msra.mxu0 0.0
    %1300 = vmatpush.msra.mxu0 0.0
    %1301 = vmatpush.msra.mxu0 0.0
    %1302 = vmatpush.msra.mxu0 0.0
    %1303 = vmatpush.msra.mxu0 0.0
    %1304 = vmatpush.msra.mxu0 0.0
    %1305 = vmatpush.msra.mxu0 0.0
    %1306 = vmatpush.msra.mxu0 0.0
    %1307 = vmatpush.msra.mxu0 0.0
    %1308 = vmatpush.msra.mxu0 0.0
    %1309 = vmatpush.msra.mxu0 0.0
    %1310 = vmatpush.msra.mxu0 0.0
    %1311 = vmatpush.msra.mxu0 0.0
    %1312 = vmatpush.msra.mxu0 %v340
    %1313 = vmatmul.f32.gmra.mxu0 %v1292
    %v1314 = vpop.f32.mrf.mxu0
    %v1315 = vadd.f32 0.0, %v1314
    %1316 = vmatmul.f32.gmra.mxu0 %v1295
    %v1317 = vpop.f32.mrf.mxu0
    %v1318 = vadd.f32 0.0, %v1317
    %1319 = vdwg.mxu0
    %v1320 = vmul.f32 %v1150, %v1286
    %v1321 = vmul.f32 %v1151, %v1289
    %v1322 = vadd.f32 %v1320, %v1315
    %v1323 = vadd.f32 %v1321, %v1318
    %1324 = vset.pattern.permute.xlu0 12
    %1325 = vperm.xlu0 %1324, %v466
    %v1326 = vpop.permute.xlu0 %1325
    %1328 = vset.pattern.permute.xlu0 12
    %1329 = vperm.xlu0 %1328, %v467
    %v1330 = vpop.permute.xlu0 %1329
    %v1332 = vmul.f32 %v1326, %v1322
    %v1333 = vmul.f32 %v1330, %v1323
    %1334 = vset.pattern.permute.xlu0 13
    %1335 = vperm.xlu0 %1334, %v466
    %v1336 = vpop.permute.xlu0 %1335
    %1338 = vset.pattern.permute.xlu0 13
    %1339 = vperm.xlu0 %1338, %v467
    %v1340 = vpop.permute.xlu0 %1339
    %v1342 = vadd.f32 %v1332, %v1336
    %v1343 = vadd.f32 %v1333, %v1340
    %v1344 = vld [vmem:[%s2 + $0x3] sm:$0x1]
    %vm1345 = vcmp.ge.f32.partialorder %v1342, 0.0
    %vm1346 = vcmp.ge.f32.partialorder %v1343, 0.0
    %1348 = vrot.lane.b32.xlu0 %v1344, 108
    %v1349 = vpop.permute.xlu0 %1348
    %s1350 = vtos %v1349
    %v1351 = vstv %s1350
    %v1353 = vmul.f32 %v1351, %v1342
    %v1354 = vmul.f32 %v1351, %v1343
    %v1355 = vsel %vm1345, %v1342, %v1353
    %v1356 = vsel %vm1346, %v1343, %v1354
    %v1357 = vld [vmem:[%s7] sm:$0xff]
    %v1358 = vld [vmem:[%s7 + $0x8] sm:$0xff]
    %v1359 = vld [vmem:[%s7 + $0x10] sm:$0xff]
    %v1360 = vld [vmem:[%s7 + $0x18] sm:$0xff]
    %1361 = vset.pattern.permute.xlu0 19
    %1362 = vperm.xlu0 %1361, %v107
    %v1363 = vpop.permute.xlu0 %1362
    %1365 = vset.pattern.permute.xlu0 19
    %1366 = vperm.xlu0 %1365, %v108
    %v1367 = vpop.permute.xlu0 %1366
    %1369 = vset.pattern.permute.xlu0 19
    %1370 = vperm.xlu0 %1369, %v109
    %v1371 = vpop.permute.xlu0 %1370
    %1373 = vset.pattern.permute.xlu0 19
    %1374 = vperm.xlu0 %1373, %v110
    %v1375 = vpop.permute.xlu0 %1374
    %v1378 = vsel %vm735, %v1357, 0
    %v1381 = vsel %vm735, %v1358, 0
    %v1384 = vsel %vm735, %v1359, 0
    %v1387 = vsel %vm735, %v1360, 0
    %1389 = vmatpush.msra.mxu0 0.0
    %1390 = vmatpush.msra.mxu0 0.0
    %1391 = vmatpush.msra.mxu0 0.0
    %1392 = vmatpush.msra.mxu0 0.0
    %1393 = vmatpush.msra.mxu0 0.0
    %1394 = vmatpush.msra.mxu0 0.0
    %1395 = vmatpush.msra.mxu0 0.0
    %1396 = vmatpush.msra.mxu0 0.0
    %1397 = vmatpush.msra.mxu0 0.0
    %1398 = vmatpush.msra.mxu0 0.0
    %1399 = vmatpush.msra.mxu0 0.0
    %1400 = vmatpush.msra.mxu0 0.0
    %1401 = vmatpush.msra.mxu0 0.0
    %1402 = vmatpush.msra.mxu0 0.0
    %1403 = vmatpush.msra.mxu0 %v1356
    %1404 = vmatpush.msra.mxu0 %v1355
    %1405 = vmatmul.f32.gmra.mxu0 %v1378
    %v1406 = vpop.f32.mrf.mxu0
    %v1407 = vadd.f32 %v1363, %v1406
    %1408 = vmatmul.f32.gmra.mxu0 %v1381
    %v1409 = vpop.f32.mrf.mxu0
    %v1410 = vadd.f32 %v1367, %v1409
    %1411 = vmatmul.f32.gmra.mxu0 %v1384
    %v1412 = vpop.f32.mrf.mxu0
    %v1413 = vadd.f32 %v1371, %v1412
    %1414 = vmatmul.f32.gmra.mxu0 %v1387
    %v1415 = vpop.f32.mrf.mxu0
    %v1416 = vadd.f32 %v1375, %v1415
    %1417 = vdwg.mxu0
    %1418 = vxpose.xlu0.b32.start [1/16] %v1407, 128
    %1419 = vxpose.xlu0.b32.cont [2/16] %v1410, 128
    %1420 = vxpose.xlu0.b32.cont [3/16] %v1413, 128
    %1421 = vxpose.xlu0.b32.cont [4/16] %v1416, 128
    %1422 = vxpose.xlu0.b32.cont [5/16] 0.0, 128
    %1423 = vxpose.xlu0.b32.cont [6/16] 0.0, 128
    %1424 = vxpose.xlu0.b32.cont [7/16] 0.0, 128
    %1425 = vxpose.xlu0.b32.cont [8/16] 0.0, 128
    %1426 = vxpose.xlu0.b32.cont [9/16] 0.0, 128
    %1427 = vxpose.xlu0.b32.cont [10/16] 0.0, 128
    %1428 = vxpose.xlu0.b32.cont [11/16] 0.0, 128
    %1429 = vxpose.xlu0.b32.cont [12/16] 0.0, 128
    %1430 = vxpose.xlu0.b32.cont [13/16] 0.0, 128
    %1431 = vxpose.xlu0.b32.cont [14/16] 0.0, 128
    %1432 = vxpose.xlu0.b32.cont [15/16] 0.0, 128
    %1433 = vxpose.xlu0.b32.end [16/16] 0.0, 128
    %v1434 = vpop.trf.xlu0
    %v1435 = vpop.trf.xlu0
    %v1436 = vpop.trf.xlu0
    %v1437 = vpop.trf.xlu0
    %v1438 = vpop.trf.xlu0
    %v1439 = vpop.trf.xlu0
    %v1440 = vpop.trf.xlu0
    %v1441 = vpop.trf.xlu0
    %v1442 = vpop.trf.xlu0
    %v1443 = vpop.trf.xlu0
    %v1444 = vpop.trf.xlu0
    %v1445 = vpop.trf.xlu0
    %v1446 = vpop.trf.xlu0
    %v1447 = vpop.trf.xlu0
    %v1448 = vpop.trf.xlu0
    %v1449 = vpop.trf.xlu0
    %1450 = vst.msk [vmem:[#allocation5] sm:$0xff] %vm478, %v1434
    %1451 = vst.msk [vmem:[#allocation5 + $0x8] sm:$0xff] %vm478, %v1435
    %1452 = vst.msk [vmem:[#allocation5 + $0x10] sm:$0xff] %vm478, %v1436
    // Predicated region
    $region38: #{tpu_custom_call.1} parent=1 // pred_check
      _
    $region39: #{tpu_custom_call.1} parent=1 // pred_check_branch
      %1454 = sbr.rel (0) target = $region41
    $region40: #{tpu_custom_call.1} parent=1 // pred_region
      %1456 = vsyncadd [#allocation4], 0
      %s1457 = sshll.u32 [#allocation5], 4
      %s1458 = int_to_ptr.vmem [resolvable:$true] %s1457
      %s1459 = sshll.u32 %s8, 4
      %s1460 = int_to_ptr.hbm [resolvable:$true] %s1459
      %1465 = dma.vmem_to_hbm [thread:$0]  %s1458, 384, %s1460, [#allocation4], 128, 128, 8
    $region41: #{tpu_custom_call.1} parent=1 // pred_fallthru
      _
    // Predicated region
    $region42: #{tpu_custom_call.1} parent=1 // pred_check
      _
    $region43: #{tpu_custom_call.1} parent=1 // pred_check_branch
      %1467 = sbr.rel (0) target = $region45
    $region44: #{tpu_custom_call.1} parent=1 // pred_region
      %1469 = dma.done [#allocation4], 384
    $region45: #{tpu_custom_call.1} parent=1 // pred_fallthru
      _
    %1470 = vsyncpa [#allocation3], 1
    %1471 = vsyncpa [#allocation4], 1

</llo_original>
